<compile_context>
chip_gen: v7x
topology: tpu7x:2x2x1
jax: 0.10.0
libtpu: 0.0.40
codegen_flags: <defaults>
</compile_context>

<pallas_src>
import random
from functools import partial

import jax
import jax.numpy as jnp
from jax.experimental import pallas as pl
from jax.experimental.pallas import tpu as pltpu


# ----------------------------------------------------------------------------
# Bilinear interpolation matrices matching F.interpolate(mode='bilinear',
# align_corners=False): src = (dst + 0.5) * in/out - 0.5, clamped at 0.
# ----------------------------------------------------------------------------
def _bilinear_weights(in_size, out_size, dtype=jnp.float32):
    scale = in_size / out_size
    dst = jnp.arange(out_size, dtype=jnp.float32)
    src = jnp.maximum((dst + 0.5) * scale - 0.5, 0.0)
    i0 = jnp.minimum(jnp.floor(src).astype(jnp.int32), in_size - 1)
    i1 = jnp.minimum(i0 + 1, in_size - 1)
    frac = src - i0.astype(jnp.float32)
    w = (jax.nn.one_hot(i0, in_size, dtype=jnp.float32) * (1.0 - frac)[:, None]
         + jax.nn.one_hot(i1, in_size, dtype=jnp.float32) * frac[:, None])
    return w.astype(dtype)  # (out_size, in_size)


# ----------------------------------------------------------------------------
# Kernels.  x_ref: (TB, H, W); wh_ref: (out_h, H); wwt_ref: (W, out_w);
# o_ref: (TB, out_h, out_w).  Both variants fold the batch tile into the
# matmul M / free-lane dims so each grid step issues two large MXU matmuls
# instead of TB tiny per-plane ones.  The pass order is picked statically in
# the wrapper so the LAST matmul produces the output batch-major (no output
# transpose) and the transposed intermediates are the smaller tensors.
# ----------------------------------------------------------------------------
def _resize_kernel_hfirst(x_ref, wh_ref, wwt_ref, o_ref):
    # Height pass first (upscale-in-width case: out_w >= w).
    tb, h, w = x_ref.shape
    out_h = wh_ref.shape[0]
    out_w = wwt_ref.shape[1]
    x = x_ref[...]
    # (out_h, H) @ (H, TB*W) -> (out_h, TB*W), f32 accumulate on the MXU.
    xt = jnp.transpose(x, (1, 0, 2)).reshape(h, tb * w)
    mid = jnp.dot(wh_ref[...], xt, preferred_element_type=jnp.float32)
    # Cast back to the storage dtype BEFORE the transpose: halves the copied
    # bytes for bf16 and feeds the second matmul in the MXU-native dtype.
    mid = mid.astype(x.dtype).reshape(out_h, tb, w)
    mid = jnp.transpose(mid, (1, 0, 2)).reshape(tb * out_h, w)
    # (TB*out_h, W) @ (W, out_w): result is batch-major -> direct, contiguous store.
    out = jnp.dot(mid, wwt_ref[...], preferred_element_type=jnp.float32)
    o_ref[...] = out.astype(o_ref.dtype).reshape(tb, out_h, out_w)


def _resize_kernel_wfirst(x_ref, wh_ref, wwt_ref, o_ref):
    # Width pass first (downscale-in-width case: out_w < w) so the transposed
    # intermediates carry out_w (< w) lanes instead of w.
    tb, h, w = x_ref.shape
    out_h = wh_ref.shape[0]
    out_w = wwt_ref.shape[1]
    x = x_ref[...]
    # (TB*H, W) @ (W, out_w) -> (TB, H, out_w), f32 accumulate.
    rows = jnp.dot(x.reshape(tb * h, w), wwt_ref[...],
                   preferred_element_type=jnp.float32)
    rows = rows.astype(x.dtype).reshape(tb, h, out_w)
    rows_h = jnp.transpose(rows, (1, 0, 2)).reshape(h, tb * out_w)
    # (out_h, H) @ (H, TB*out_w) -> (out_h, TB, out_w).
    out = jnp.dot(wh_ref[...], rows_h, preferred_element_type=jnp.float32)
    # Cast to the output dtype BEFORE the final transpose (vst-slot relief).
    out = out.astype(o_ref.dtype).reshape(out_h, tb, out_w)
    o_ref[...] = jnp.transpose(out, (1, 0, 2))


# ----------------------------------------------------------------------------
# Tile sizing: per-chip VMEM budget from get_tpu_info(), footprint includes
# the f32 temporaries and transpose copies (transposes/reshapes are not views).
# ----------------------------------------------------------------------------
def _vmem_capacity_bytes():
    try:
        info = pltpu.get_tpu_info()
        cap = getattr(info, "vmem_capacity_bytes", None)
        if cap:
            return int(cap)
    except Exception:
        pass
    return 64 * 1024 * 1024  # conservative default (v7x per-core VMEM)


def _per_plane_bytes(h, w, out_h, out_w, itemsize, height_first):
    """Per-image-plane VMEM bytes for one grid step."""
    io = 2 * (h * w + out_h * out_w) * itemsize          # double-buffered in/out blocks
    if height_first:
        tmp = (h * w * itemsize                           # input transpose copy
               + out_h * w * 4                            # f32 height-pass result
               + 2 * out_h * w * itemsize                 # cast + transpose copies
               + out_h * out_w * 4                        # f32 width-pass result
               + out_h * out_w * itemsize)                # cast before store
    else:
        tmp = (h * out_w * 4                              # f32 width-pass result
               + 2 * h * out_w * itemsize                 # cast + transpose copies
               + out_h * out_w * 4                        # f32 height-pass result
               + 2 * out_h * out_w * itemsize)            # cast + output transpose
    return io + tmp


def _pick_batch_tile(b, per_plane_bytes, budget_bytes):
    tb = max(1, int(budget_bytes) // max(int(per_plane_bytes), 1))
    tb = min(tb, b)
    # Keep >= 4 grid steps when the batch is large enough: feeds both v7x
    # TensorCores (batch axis is "parallel") and gives the double-buffered
    # pipeline enough steps to hide HBM<->VMEM DMA.
    min_steps = 4
    if b >= 4 * min_steps:
        tb = min(tb, -(-b // min_steps))
    # Prefer a tile that divides b (no ragged, masked last block), as long as
    # that shrinks the tile by at most ~25%.
    for d in range(tb, max(1, (3 * tb) // 4) - 1, -1):
        if b % d == 0:
            return int(d)
    return int(tb)


# ----------------------------------------------------------------------------
# Wrapper.
# ----------------------------------------------------------------------------
@partial(jax.jit, static_argnames=("size",))
def bilinear_resize_nchw(x, size):
    """Pallas bilinear resize (align_corners=False) of an NCHW tensor to `size`."""
    n, c, h, w = x.shape
    out_h, out_w = size
    b = n * c
    itemsize = jnp.dtype(x.dtype).itemsize

    # Interpolation matrices in the input dtype (bf16 stays bf16 on the MXU).
    # TODO(synk): for very large H/W (thousands) these dense (out x in) matrices
    # stop fitting VMEM; a gather + 2-tap lerp formulation (or a blocked
    # contraction axis with an accumulator) would be needed there.
    wh = _bilinear_weights(h, out_h, dtype=x.dtype)       # (out_h, H)
    wwt = _bilinear_weights(w, out_w, dtype=x.dtype).T    # (W, out_w)

    xb = x.reshape(b, h, w)
    height_first = out_w >= w  # upscale-in-width (common augment case)
    kernel = _resize_kernel_hfirst if height_first else _resize_kernel_wfirst

    # Per-chip VMEM budgeting: raise the scoped limit (v5e default is only
    # 16 MiB) and size the batch tile from the real per-step footprint.
    vmem_cap = _vmem_capacity_bytes()
    vmem_limit = min(int(0.75 * vmem_cap), 96 * 1024 * 1024)   # 96 MiB v5e/v6e, ~48 MiB v7x
    weight_bytes = 2 * (out_h * h + w * out_w) * itemsize      # resident (double-buffered)
    budget = max(int(0.8 * (vmem_limit - weight_bytes)), 1)    # headroom for compiler scratch
    per_plane = _per_plane_bytes(h, w, out_h, out_w, itemsize, height_first)
    tb = _pick_batch_tile(b, per_plane, budget)
    grid = (pl.cdiv(b, tb),)

    if height_first:
        flops = 2 * b * (out_h * h * w + out_h * w * out_w)
    else:
        flops = 2 * b * (h * w * out_w + out_h * h * out_w)
    bytes_accessed = (b * (h * w + out_h * out_w) + out_h * h + w * out_w) * itemsize

    out = pl.pallas_call(
        kernel,
        out_shape=jax.ShapeDtypeStruct((b, out_h, out_w), x.dtype),
        grid=grid,
        in_specs=[
            pl.BlockSpec((tb, h, w), lambda i: (i, 0, 0)),   # batch-tiled image planes
            pl.BlockSpec((out_h, h), lambda i: (0, 0)),      # Wh: fetched once, resident
            pl.BlockSpec((w, out_w), lambda i: (0, 0)),      # Ww^T: fetched once, resident
        ],
        out_specs=pl.BlockSpec((tb, out_h, out_w), lambda i: (i, 0, 0)),
        compiler_params=pltpu.CompilerParams(
            dimension_semantics=("parallel",),               # 2 TCs on v7x
            vmem_limit_bytes=vmem_limit),
        cost_estimate=pl.CostEstimate(
            flops=flops, transcendentals=0, bytes_accessed=bytes_accessed),
    )(xb, wh, wwt)
    return out.reshape(n, c, out_h, out_w)


class RandResize:
    """JAX/Pallas port of the PyTorch RandResize module."""

    def __init__(self, size, chance):
        self.size = tuple(size)
        self.chance = chance

    def __call__(self, x):
        # torch.rand([]) equivalent drawn on host: preserves the Python-level
        # dynamic branch (output shape differs between branches) without a
        # device round-trip / sync.
        # TODO(synk): the shape-changing branch cannot be expressed as a single
        # jitted lax.cond; the Bernoulli draw therefore stays host-side.
        if random.random() < self.chance:
            return bilinear_resize_nchw(x, self.size)
        return x


if __name__ == "__main__":
    random.seed(0)
    key = jax.random.PRNGKey(0)

    N, C, H, W = 2, 4, 16, 16
    x = jax.random.normal(key, (N, C, H, W), dtype=jnp.float32)

    def ref_resize(x32, size):
        rh = _bilinear_weights(x32.shape[2], size[0])
        rwt = _bilinear_weights(x32.shape[3], size[1]).T
        return jnp.einsum('oh,nchw,wq->ncoq', rh, x32, rwt)

    # Upscale (height-first kernel path).  chance=1.0 guarantees the resize
    # (kernel) branch executes; the random draw still happens like in PyTorch.
    up = (24, 24)
    y_up = jax.block_until_ready(RandResize(size=up, chance=1.0)(x))
    assert y_up.shape == (N, C, up[0], up[1]), y_up.shape
    assert y_up.dtype == x.dtype
    assert jnp.allclose(y_up, ref_resize(x, up), atol=1e-5, rtol=1e-5)

    # Downscale (width-first kernel path).
    down = (8, 12)
    y_dn = jax.block_until_ready(RandResize(size=down, chance=1.0)(x))
    assert y_dn.shape == (N, C, down[0], down[1]), y_dn.shape
    assert jnp.allclose(y_dn, ref_resize(x, down), atol=1e-5, rtol=1e-5)

    # bf16 path (looser tolerance: bf16 weights / intermediates, f32 accumulate).
    x_b16 = x.astype(jnp.bfloat16)
    y_b16 = jax.block_until_ready(bilinear_resize_nchw(x_b16, up))
    assert y_b16.dtype == jnp.bfloat16
    assert jnp.allclose(y_b16.astype(jnp.float32), ref_resize(x, up),
                        atol=5e-2, rtol=5e-2)

    # Identity branch (chance=0.0 -> never resize, input returned unchanged).
    y_id = RandResize(size=up, chance=0.0)(x)
    assert y_id is x

    print("KERNEL_OK")
</pallas_src>

<mosaic_0001>
module attributes {stable_mosaic.version = 11 : i64} {
  func.func @_resize_kernel_hfirst(%arg0: i32, %arg1: memref<8x16x16xf32, #tpu.memory_space<vmem>>, %arg2: memref<24x16xf32, #tpu.memory_space<vmem>>, %arg3: memref<16x24xf32, #tpu.memory_space<vmem>>, %arg4: memref<8x24x24xf32, #tpu.memory_space<vmem>>) attributes {dimension_semantics = [#tpu.dimension_semantics<parallel>], iteration_bounds = array<i64: 1>, scalar_prefetch = 0 : i64, scratch_operands = 0 : i64, tpu.core_type = #tpu.core_type<tc>, window_params = [{transform_indices = @transform_0, window_bounds = array<i64: 8, 16, 16>}, {pipeline_mode = #tpu.pipeline_mode<synchronous>, transform_indices = @transform_1, window_bounds = array<i64: 24, 16>}, {pipeline_mode = #tpu.pipeline_mode<synchronous>, transform_indices = @transform_2, window_bounds = array<i64: 16, 24>}, {transform_indices = @transform_3, window_bounds = array<i64: 8, 24, 24>}]} {
    %c0 = arith.constant 0 : index
    %c0_0 = arith.constant 0 : index
    %c0_1 = arith.constant 0 : index
    %0 = vector.load %arg1[%c0, %c0_0, %c0_1] : memref<8x16x16xf32, #tpu.memory_space<vmem>>, vector<8x16x16xf32>
    %1 = tpu.transpose %0, [1, 0, 2] : vector<8x16x16xf32> -> vector<16x8x16xf32>
    %2 = vector.shape_cast %1 : vector<16x8x16xf32> to vector<16x128xf32>
    %c0_2 = arith.constant 0 : index
    %c0_3 = arith.constant 0 : index
    %3 = vector.load %arg2[%c0_2, %c0_3] : memref<24x16xf32, #tpu.memory_space<vmem>>, vector<24x16xf32>
    %cst = arith.constant dense<0.000000e+00> : vector<24x128xf32>
    %4 = tpu.matmul %3, %2, %cst {dimension_numbers = #tpu.dot_dimension_numbers<[1], [0], [0], [1], [0, 0, 1, 1], [], []>} : vector<24x16xf32>, vector<16x128xf32>, vector<24x128xf32> -> vector<24x128xf32>
    %5 = vector.shape_cast %4 : vector<24x128xf32> to vector<24x8x16xf32>
    %6 = tpu.transpose %5, [1, 0, 2] : vector<24x8x16xf32> -> vector<8x24x16xf32>
    %7 = vector.shape_cast %6 : vector<8x24x16xf32> to vector<192x16xf32>
    %c0_4 = arith.constant 0 : index
    %c0_5 = arith.constant 0 : index
    %8 = vector.load %arg3[%c0_4, %c0_5] : memref<16x24xf32, #tpu.memory_space<vmem>>, vector<16x24xf32>
    %cst_6 = arith.constant dense<0.000000e+00> : vector<192x24xf32>
    %9 = tpu.matmul %7, %8, %cst_6 {dimension_numbers = #tpu.dot_dimension_numbers<[1], [0], [0], [1], [0, 0, 1, 1], [], []>} : vector<192x16xf32>, vector<16x24xf32>, vector<192x24xf32> -> vector<192x24xf32>
    %10 = vector.shape_cast %9 : vector<192x24xf32> to vector<8x24x24xf32>
    %c0_7 = arith.constant 0 : index
    %c0_8 = arith.constant 0 : index
    %c0_9 = arith.constant 0 : index
    %11 = vector.load %arg4[%c0_7, %c0_8, %c0_9] : memref<8x24x24xf32, #tpu.memory_space<vmem>>, vector<8x24x24xf32>
    tpu.vector_store %arg4[%c0_7, %c0_8, %c0_9], %10 {strides = array<i32>} : memref<8x24x24xf32, #tpu.memory_space<vmem>>, vector<8x24x24xf32>,
    return
  }
  func.func @transform_0(%arg0: i32) -> (i32, i32, i32) {
    %c0_i32 = arith.constant 0 : i32
    %c0_i32_0 = arith.constant 0 : i32
    %c0_i32_1 = arith.constant 0 : i32
    return %arg0, %c0_i32, %c0_i32_0 : i32, i32, i32
  }
  func.func @transform_1(%arg0: i32) -> (i32, i32) {
    %c0_i32 = arith.constant 0 : i32
    %c0_i32_0 = arith.constant 0 : i32
    %c0_i32_1 = arith.constant 0 : i32
    return %c0_i32, %c0_i32_0 : i32, i32
  }
  func.func @transform_2(%arg0: i32) -> (i32, i32) {
    %c0_i32 = arith.constant 0 : i32
    %c0_i32_0 = arith.constant 0 : i32
    %c0_i32_1 = arith.constant 0 : i32
    return %c0_i32, %c0_i32_0 : i32, i32
  }
  func.func @transform_3(%arg0: i32) -> (i32, i32, i32) {
    %c0_i32 = arith.constant 0 : i32
    %c0_i32_0 = arith.constant 0 : i32
    %c0_i32_1 = arith.constant 0 : i32
    return %arg0, %c0_i32, %c0_i32_0 : i32, i32, i32
  }
}

</mosaic_0001>

<llo_original>
// kernel: bilinear_resize_nchw.1
$region0: #{bilinear_resize_nchw.1}
  #allocation0 [shape = 'u32[]', space=smem, size = 0x4, offset = 0x4, fixed_abs, tag = 'smem constant byte address 0x4 - core index']
  #allocation1 [shape = 'u32[144,128]{1,0:T(1,128)}', space=vmem, size = 0x12000, scoped, tag = 'internal scratch']
  %s0 = inlined_call_operand.hbm [shape: f32[8,16,16], index: 0, kind: input, shape index: {}]
  %s1 = inlined_call_operand.vmem [shape: f32[24,16], index: 1, kind: input, shape index: {}]
  %s2 = inlined_call_operand.vmem [shape: f32[16,24], index: 2, kind: input, shape index: {}]
  %s3 = inlined_call_operand.hbm [shape: f32[8,24,24], index: 3, kind: output, shape index: {}]
  %s4 = sld [smem:[#allocation0]]
  $region26: #{bilinear_resize_nchw.1} parent=0
    _
  %s6 = ssub.s32 1, %s4
  %s7 = scalar_select 0, %s6, %s4
  $region1: #{bilinear_resize_nchw.1} parent=0
    #allocation2 [shape = 'u8[65536]{0}', space=vmem, size = 0x10000, scoped, tag = 'input window, operand 0, single buffered']
    #allocation3 [shape = 's32[1]{0}', space=sflag, size = 0x4, scoped, tag = 'scoped memory for bilinear_resize_nchw.1']
    #allocation4 [shape = 's32[1]{0}', space=sflag, size = 0x4, scoped, tag = 'scoped memory for bilinear_resize_nchw.1']
    #allocation5 [shape = 'u8[98304]{0}', space=vmem, size = 0x18000, scoped, tag = 'output window, operand 0, single buffered']
    %8 = vsyncpa [#allocation3], 0
    %9 = vsyncpa [#allocation4], 0
    // Predicated region
    $region2: #{bilinear_resize_nchw.1} parent=1 // pred_check
      _
    $region3: #{bilinear_resize_nchw.1} parent=1 // pred_check_branch
      %11 = sbr.rel (0) target = $region5
    $region4: #{bilinear_resize_nchw.1} parent=1 // pred_region
      %s13 = ssub.s32 2048, 2048
      %14 = vsyncadd [#allocation3], %s13
      %s15 = sshll.u32 [#allocation2], 4
      %s16 = int_to_ptr.vmem [resolvable:$true] %s15
      %21 = dma.hbm_to_vmem [thread:$0]  %s0, 2048, %s16, [#allocation3], 128, 128, 8
    $region5: #{bilinear_resize_nchw.1} parent=1 // pred_fallthru
      _
    // Predicated region
    $region6: #{bilinear_resize_nchw.1} parent=1 // pred_check
      _
    $region7: #{bilinear_resize_nchw.1} parent=1 // pred_check_branch
      %23 = sbr.rel (0) target = $region9
    $region8: #{bilinear_resize_nchw.1} parent=1 // pred_region
      _
    $region9: #{bilinear_resize_nchw.1} parent=1 // pred_fallthru
      _
    // Predicated region
    $region10: #{bilinear_resize_nchw.1} parent=1 // pred_check
      _
    $region11: #{bilinear_resize_nchw.1} parent=1 // pred_check_branch
      %25 = sbr.rel (0) target = $region13
    $region12: #{bilinear_resize_nchw.1} parent=1 // pred_region
      _
    $region13: #{bilinear_resize_nchw.1} parent=1 // pred_fallthru
      _
    // Predicated region
    $region14: #{bilinear_resize_nchw.1} parent=1 // pred_check
      _
    $region15: #{bilinear_resize_nchw.1} parent=1 // pred_check_branch
      %27 = sbr.rel (0) target = $region17
    $region16: #{bilinear_resize_nchw.1} parent=1 // pred_region
      %28 = dma.done [#allocation3], 2048
    $region17: #{bilinear_resize_nchw.1} parent=1 // pred_fallthru
      _
    %v29 = vld [vmem:[#allocation2] sm:$0xff]
    %v30 = vld [vmem:[#allocation2 + $0x8] sm:$0xff]
    %v31 = vld [vmem:[#allocation2 + $0x10] sm:$0xff]
    %v32 = vld [vmem:[#allocation2 + $0x18] sm:$0xff]
    %v33 = vld [vmem:[#allocation2 + $0x20] sm:$0xff]
    %v34 = vld [vmem:[#allocation2 + $0x28] sm:$0xff]
    %v35 = vld [vmem:[#allocation2 + $0x30] sm:$0xff]
    %v36 = vld [vmem:[#allocation2 + $0x38] sm:$0xff]
    %v37 = vld [vmem:[#allocation2 + $0x40] sm:$0xff]
    %v38 = vld [vmem:[#allocation2 + $0x48] sm:$0xff]
    %v39 = vld [vmem:[#allocation2 + $0x50] sm:$0xff]
    %v40 = vld [vmem:[#allocation2 + $0x58] sm:$0xff]
    %v41 = vld [vmem:[#allocation2 + $0x60] sm:$0xff]
    %v42 = vld [vmem:[#allocation2 + $0x68] sm:$0xff]
    %v43 = vld [vmem:[#allocation2 + $0x70] sm:$0xff]
    %v44 = vld [vmem:[#allocation2 + $0x78] sm:$0xff]
    %v45 = vcombine.low %v29, %v33
    %v46 = vcombine.high %v29, %v33
    %v48 = vunpack.c.l.s4 1983009808
    %v49 = vunpack.c.0.s8 %v48
    %v50 = vlaneseq
    %v51 = vshrl.u32 %v50, 7
    %v52 = vsub.s32 %v49, %v51
    %v53 = vrot.slane %v45, %v52
    %v55 = vunpack.c.l.s4 1983009808
    %v56 = vunpack.c.0.s8 %v55
    %v57 = vlaneseq
    %v58 = vshrl.u32 %v57, 7
    %v59 = vsub.s32 %v56, %v58
    %v60 = vrot.slane %v46, %v59
    %v61 = vcombine.low %v31, %v35
    %v62 = vcombine.high %v31, %v35
    %v64 = vunpack.c.l.s4 1983009808
    %v65 = vunpack.c.0.s8 %v64
    %v66 = vlaneseq
    %v67 = vshrl.u32 %v66, 7
    %v68 = vsub.s32 %v65, %v67
    %v69 = vrot.slane %v61, %v68
    %v71 = vunpack.c.l.s4 1983009808
    %v72 = vunpack.c.0.s8 %v71
    %v73 = vlaneseq
    %v74 = vshrl.u32 %v73, 7
    %v75 = vsub.s32 %v72, %v74
    %v76 = vrot.slane %v62, %v75
    %v77 = vcombine.low %v37, %v41
    %v78 = vcombine.high %v37, %v41
    %v80 = vunpack.c.l.s4 1983009808
    %v81 = vunpack.c.0.s8 %v80
    %v82 = vlaneseq
    %v83 = vshrl.u32 %v82, 7
    %v84 = vsub.s32 %v81, %v83
    %v85 = vrot.slane %v77, %v84
    %v87 = vunpack.c.l.s4 1983009808
    %v88 = vunpack.c.0.s8 %v87
    %v89 = vlaneseq
    %v90 = vshrl.u32 %v89, 7
    %v91 = vsub.s32 %v88, %v90
    %v92 = vrot.slane %v78, %v91
    %v93 = vcombine.low %v39, %v43
    %v94 = vcombine.high %v39, %v43
    %v96 = vunpack.c.l.s4 1983009808
    %v97 = vunpack.c.0.s8 %v96
    %v98 = vlaneseq
    %v99 = vshrl.u32 %v98, 7
    %v100 = vsub.s32 %v97, %v99
    %v101 = vrot.slane %v93, %v100
    %v103 = vunpack.c.l.s4 1983009808
    %v104 = vunpack.c.0.s8 %v103
    %v105 = vlaneseq
    %v106 = vshrl.u32 %v105, 7
    %v107 = vsub.s32 %v104, %v106
    %v108 = vrot.slane %v94, %v107
    %v109 = vcombine.low %v53, %v69
    %v110 = vcombine.high %v53, %v69
    %v112 = vunpack.c.l.s4 1934713408
    %v113 = vunpack.c.0.s8 %v112
    %v114 = vlaneseq
    %v115 = vshrl.u32 %v114, 7
    %v116 = vsub.s32 %v113, %v115
    %v117 = vrot.slane %v109, %v116
    %v119 = vunpack.c.l.s4 1934713408
    %v120 = vunpack.c.0.s8 %v119
    %v121 = vlaneseq
    %v122 = vshrl.u32 %v121, 7
    %v123 = vsub.s32 %v120, %v122
    %v124 = vrot.slane %v110, %v123
    %v125 = vcombine.low %v60, %v76
    %v126 = vcombine.high %v60, %v76
    %v128 = vunpack.c.l.s4 1934713408
    %v129 = vunpack.c.0.s8 %v128
    %v130 = vlaneseq
    %v131 = vshrl.u32 %v130, 7
    %v132 = vsub.s32 %v129, %v131
    %v133 = vrot.slane %v125, %v132
    %v135 = vunpack.c.l.s4 1934713408
    %v136 = vunpack.c.0.s8 %v135
    %v137 = vlaneseq
    %v138 = vshrl.u32 %v137, 7
    %v139 = vsub.s32 %v136, %v138
    %v140 = vrot.slane %v126, %v139
    %v141 = vcombine.low %v85, %v101
    %v142 = vcombine.high %v85, %v101
    %v144 = vunpack.c.l.s4 1934713408
    %v145 = vunpack.c.0.s8 %v144
    %v146 = vlaneseq
    %v147 = vshrl.u32 %v146, 7
    %v148 = vsub.s32 %v145, %v147
    %v149 = vrot.slane %v141, %v148
    %v151 = vunpack.c.l.s4 1934713408
    %v152 = vunpack.c.0.s8 %v151
    %v153 = vlaneseq
    %v154 = vshrl.u32 %v153, 7
    %v155 = vsub.s32 %v152, %v154
    %v156 = vrot.slane %v142, %v155
    %v157 = vcombine.low %v92, %v108
    %v158 = vcombine.high %v92, %v108
    %v160 = vunpack.c.l.s4 1934713408
    %v161 = vunpack.c.0.s8 %v160
    %v162 = vlaneseq
    %v163 = vshrl.u32 %v162, 7
    %v164 = vsub.s32 %v161, %v163
    %v165 = vrot.slane %v157, %v164
    %v167 = vunpack.c.l.s4 1934713408
    %v168 = vunpack.c.0.s8 %v167
    %v169 = vlaneseq
    %v170 = vshrl.u32 %v169, 7
    %v171 = vsub.s32 %v168, %v170
    %v172 = vrot.slane %v158, %v171
    %v173 = vcombine.low %v117, %v149
    %v174 = vcombine.high %v117, %v149
    %v175 = vcombine.low %v124, %v156
    %v176 = vcombine.high %v124, %v156
    %v177 = vcombine.low %v133, %v165
    %v178 = vcombine.high %v133, %v165
    %v179 = vcombine.low %v140, %v172
    %v180 = vcombine.high %v140, %v172
    %v181 = vcombine.low %v30, %v34
    %v182 = vcombine.high %v30, %v34
    %v184 = vunpack.c.l.s4 1983009808
    %v185 = vunpack.c.0.s8 %v184
    %v186 = vlaneseq
    %v187 = vshrl.u32 %v186, 7
    %v188 = vsub.s32 %v185, %v187
    %v189 = vrot.slane %v181, %v188
    %v191 = vunpack.c.l.s4 1983009808
    %v192 = vunpack.c.0.s8 %v191
    %v193 = vlaneseq
    %v194 = vshrl.u32 %v193, 7
    %v195 = vsub.s32 %v192, %v194
    %v196 = vrot.slane %v182, %v195
    %v197 = vcombine.low %v32, %v36
    %v198 = vcombine.high %v32, %v36
    %v200 = vunpack.c.l.s4 1983009808
    %v201 = vunpack.c.0.s8 %v200
    %v202 = vlaneseq
    %v203 = vshrl.u32 %v202, 7
    %v204 = vsub.s32 %v201, %v203
    %v205 = vrot.slane %v197, %v204
    %v207 = vunpack.c.l.s4 1983009808
    %v208 = vunpack.c.0.s8 %v207
    %v209 = vlaneseq
    %v210 = vshrl.u32 %v209, 7
    %v211 = vsub.s32 %v208, %v210
    %v212 = vrot.slane %v198, %v211
    %v213 = vcombine.low %v38, %v42
    %v214 = vcombine.high %v38, %v42
    %v216 = vunpack.c.l.s4 1983009808
    %v217 = vunpack.c.0.s8 %v216
    %v218 = vlaneseq
    %v219 = vshrl.u32 %v218, 7
    %v220 = vsub.s32 %v217, %v219
    %v221 = vrot.slane %v213, %v220
    %v223 = vunpack.c.l.s4 1983009808
    %v224 = vunpack.c.0.s8 %v223
    %v225 = vlaneseq
    %v226 = vshrl.u32 %v225, 7
    %v227 = vsub.s32 %v224, %v226
    %v228 = vrot.slane %v214, %v227
    %v229 = vcombine.low %v40, %v44
    %v230 = vcombine.high %v40, %v44
    %v232 = vunpack.c.l.s4 1983009808
    %v233 = vunpack.c.0.s8 %v232
    %v234 = vlaneseq
    %v235 = vshrl.u32 %v234, 7
    %v236 = vsub.s32 %v233, %v235
    %v237 = vrot.slane %v229, %v236
    %v239 = vunpack.c.l.s4 1983009808
    %v240 = vunpack.c.0.s8 %v239
    %v241 = vlaneseq
    %v242 = vshrl.u32 %v241, 7
    %v243 = vsub.s32 %v240, %v242
    %v244 = vrot.slane %v230, %v243
    %v245 = vcombine.low %v189, %v205
    %v246 = vcombine.high %v189, %v205
    %v248 = vunpack.c.l.s4 1934713408
    %v249 = vunpack.c.0.s8 %v248
    %v250 = vlaneseq
    %v251 = vshrl.u32 %v250, 7
    %v252 = vsub.s32 %v249, %v251
    %v253 = vrot.slane %v245, %v252
    %v255 = vunpack.c.l.s4 1934713408
    %v256 = vunpack.c.0.s8 %v255
    %v257 = vlaneseq
    %v258 = vshrl.u32 %v257, 7
    %v259 = vsub.s32 %v256, %v258
    %v260 = vrot.slane %v246, %v259
    %v261 = vcombine.low %v196, %v212
    %v262 = vcombine.high %v196, %v212
    %v264 = vunpack.c.l.s4 1934713408
    %v265 = vunpack.c.0.s8 %v264
    %v266 = vlaneseq
    %v267 = vshrl.u32 %v266, 7
    %v268 = vsub.s32 %v265, %v267
    %v269 = vrot.slane %v261, %v268
    %v271 = vunpack.c.l.s4 1934713408
    %v272 = vunpack.c.0.s8 %v271
    %v273 = vlaneseq
    %v274 = vshrl.u32 %v273, 7
    %v275 = vsub.s32 %v272, %v274
    %v276 = vrot.slane %v262, %v275
    %v277 = vcombine.low %v221, %v237
    %v278 = vcombine.high %v221, %v237
    %v280 = vunpack.c.l.s4 1934713408
    %v281 = vunpack.c.0.s8 %v280
    %v282 = vlaneseq
    %v283 = vshrl.u32 %v282, 7
    %v284 = vsub.s32 %v281, %v283
    %v285 = vrot.slane %v277, %v284
    %v287 = vunpack.c.l.s4 1934713408
    %v288 = vunpack.c.0.s8 %v287
    %v289 = vlaneseq
    %v290 = vshrl.u32 %v289, 7
    %v291 = vsub.s32 %v288, %v290
    %v292 = vrot.slane %v278, %v291
    %v293 = vcombine.low %v228, %v244
    %v294 = vcombine.high %v228, %v244
    %v296 = vunpack.c.l.s4 1934713408
    %v297 = vunpack.c.0.s8 %v296
    %v298 = vlaneseq
    %v299 = vshrl.u32 %v298, 7
    %v300 = vsub.s32 %v297, %v299
    %v301 = vrot.slane %v293, %v300
    %v303 = vunpack.c.l.s4 1934713408
    %v304 = vunpack.c.0.s8 %v303
    %v305 = vlaneseq
    %v306 = vshrl.u32 %v305, 7
    %v307 = vsub.s32 %v304, %v306
    %v308 = vrot.slane %v294, %v307
    %v309 = vcombine.low %v253, %v285
    %v310 = vcombine.high %v253, %v285
    %v311 = vcombine.low %v260, %v292
    %v312 = vcombine.high %v260, %v292
    %v313 = vcombine.low %v269, %v301
    %v314 = vcombine.high %v269, %v301
    %v315 = vcombine.low %v276, %v308
    %v316 = vcombine.high %v276, %v308
    %v317 = vcombine.low %v173, %v175
    %v318 = vcombine.high %v173, %v175
    %v320 = vunpack.c.l.s4 1983009808
    %v321 = vunpack.c.0.s8 %v320
    %v322 = vlaneseq
    %v323 = vshrl.u32 %v322, 7
    %v324 = vsub.s32 %v321, %v323
    %v325 = vrot.slane %v317, %v324
    %v327 = vunpack.c.l.s4 1983009808
    %v328 = vunpack.c.0.s8 %v327
    %v329 = vlaneseq
    %v330 = vshrl.u32 %v329, 7
    %v331 = vsub.s32 %v328, %v330
    %v332 = vrot.slane %v318, %v331
    %v333 = vcombine.low %v174, %v176
    %v334 = vcombine.high %v174, %v176
    %v336 = vunpack.c.l.s4 1983009808
    %v337 = vunpack.c.0.s8 %v336
    %v338 = vlaneseq
    %v339 = vshrl.u32 %v338, 7
    %v340 = vsub.s32 %v337, %v339
    %v341 = vrot.slane %v333, %v340
    %v343 = vunpack.c.l.s4 1983009808
    %v344 = vunpack.c.0.s8 %v343
    %v345 = vlaneseq
    %v346 = vshrl.u32 %v345, 7
    %v347 = vsub.s32 %v344, %v346
    %v348 = vrot.slane %v334, %v347
    %v349 = vcombine.low %v177, %v179
    %v350 = vcombine.high %v177, %v179
    %v352 = vunpack.c.l.s4 1983009808
    %v353 = vunpack.c.0.s8 %v352
    %v354 = vlaneseq
    %v355 = vshrl.u32 %v354, 7
    %v356 = vsub.s32 %v353, %v355
    %v357 = vrot.slane %v349, %v356
    %v359 = vunpack.c.l.s4 1983009808
    %v360 = vunpack.c.0.s8 %v359
    %v361 = vlaneseq
    %v362 = vshrl.u32 %v361, 7
    %v363 = vsub.s32 %v360, %v362
    %v364 = vrot.slane %v350, %v363
    %v365 = vcombine.low %v178, %v180
    %v366 = vcombine.high %v178, %v180
    %v368 = vunpack.c.l.s4 1983009808
    %v369 = vunpack.c.0.s8 %v368
    %v370 = vlaneseq
    %v371 = vshrl.u32 %v370, 7
    %v372 = vsub.s32 %v369, %v371
    %v373 = vrot.slane %v365, %v372
    %v375 = vunpack.c.l.s4 1983009808
    %v376 = vunpack.c.0.s8 %v375
    %v377 = vlaneseq
    %v378 = vshrl.u32 %v377, 7
    %v379 = vsub.s32 %v376, %v378
    %v380 = vrot.slane %v366, %v379
    %v381 = vcombine.low %v325, %v341
    %v382 = vcombine.high %v325, %v341
    %v384 = vunpack.c.l.s4 1934713408
    %v385 = vunpack.c.0.s8 %v384
    %v386 = vlaneseq
    %v387 = vshrl.u32 %v386, 7
    %v388 = vsub.s32 %v385, %v387
    %v389 = vrot.slane %v381, %v388
    %v391 = vunpack.c.l.s4 1934713408
    %v392 = vunpack.c.0.s8 %v391
    %v393 = vlaneseq
    %v394 = vshrl.u32 %v393, 7
    %v395 = vsub.s32 %v392, %v394
    %v396 = vrot.slane %v382, %v395
    %v397 = vcombine.low %v332, %v348
    %v398 = vcombine.high %v332, %v348
    %v400 = vunpack.c.l.s4 1934713408
    %v401 = vunpack.c.0.s8 %v400
    %v402 = vlaneseq
    %v403 = vshrl.u32 %v402, 7
    %v404 = vsub.s32 %v401, %v403
    %v405 = vrot.slane %v397, %v404
    %v407 = vunpack.c.l.s4 1934713408
    %v408 = vunpack.c.0.s8 %v407
    %v409 = vlaneseq
    %v410 = vshrl.u32 %v409, 7
    %v411 = vsub.s32 %v408, %v410
    %v412 = vrot.slane %v398, %v411
    %v413 = vcombine.low %v357, %v373
    %v414 = vcombine.high %v357, %v373
    %v416 = vunpack.c.l.s4 1934713408
    %v417 = vunpack.c.0.s8 %v416
    %v418 = vlaneseq
    %v419 = vshrl.u32 %v418, 7
    %v420 = vsub.s32 %v417, %v419
    %v421 = vrot.slane %v413, %v420
    %v423 = vunpack.c.l.s4 1934713408
    %v424 = vunpack.c.0.s8 %v423
    %v425 = vlaneseq
    %v426 = vshrl.u32 %v425, 7
    %v427 = vsub.s32 %v424, %v426
    %v428 = vrot.slane %v414, %v427
    %v429 = vcombine.low %v364, %v380
    %v430 = vcombine.high %v364, %v380
    %v432 = vunpack.c.l.s4 1934713408
    %v433 = vunpack.c.0.s8 %v432
    %v434 = vlaneseq
    %v435 = vshrl.u32 %v434, 7
    %v436 = vsub.s32 %v433, %v435
    %v437 = vrot.slane %v429, %v436
    %v439 = vunpack.c.l.s4 1934713408
    %v440 = vunpack.c.0.s8 %v439
    %v441 = vlaneseq
    %v442 = vshrl.u32 %v441, 7
    %v443 = vsub.s32 %v440, %v442
    %v444 = vrot.slane %v430, %v443
    %v445 = vcombine.low %v389, %v421
    %v446 = vcombine.high %v389, %v421
    %v447 = vcombine.low %v396, %v428
    %v448 = vcombine.high %v396, %v428
    %v449 = vcombine.low %v405, %v437
    %v450 = vcombine.high %v405, %v437
    %v451 = vcombine.low %v412, %v444
    %v452 = vcombine.high %v412, %v444
    %v453 = vcombine.low %v309, %v311
    %v454 = vcombine.high %v309, %v311
    %v456 = vunpack.c.l.s4 1983009808
    %v457 = vunpack.c.0.s8 %v456
    %v458 = vlaneseq
    %v459 = vshrl.u32 %v458, 7
    %v460 = vsub.s32 %v457, %v459
    %v461 = vrot.slane %v453, %v460
    %v463 = vunpack.c.l.s4 1983009808
    %v464 = vunpack.c.0.s8 %v463
    %v465 = vlaneseq
    %v466 = vshrl.u32 %v465, 7
    %v467 = vsub.s32 %v464, %v466
    %v468 = vrot.slane %v454, %v467
    %v469 = vcombine.low %v310, %v312
    %v470 = vcombine.high %v310, %v312
    %v472 = vunpack.c.l.s4 1983009808
    %v473 = vunpack.c.0.s8 %v472
    %v474 = vlaneseq
    %v475 = vshrl.u32 %v474, 7
    %v476 = vsub.s32 %v473, %v475
    %v477 = vrot.slane %v469, %v476
    %v479 = vunpack.c.l.s4 1983009808
    %v480 = vunpack.c.0.s8 %v479
    %v481 = vlaneseq
    %v482 = vshrl.u32 %v481, 7
    %v483 = vsub.s32 %v480, %v482
    %v484 = vrot.slane %v470, %v483
    %v485 = vcombine.low %v313, %v315
    %v486 = vcombine.high %v313, %v315
    %v488 = vunpack.c.l.s4 1983009808
    %v489 = vunpack.c.0.s8 %v488
    %v490 = vlaneseq
    %v491 = vshrl.u32 %v490, 7
    %v492 = vsub.s32 %v489, %v491
    %v493 = vrot.slane %v485, %v492
    %v495 = vunpack.c.l.s4 1983009808
    %v496 = vunpack.c.0.s8 %v495
    %v497 = vlaneseq
    %v498 = vshrl.u32 %v497, 7
    %v499 = vsub.s32 %v496, %v498
    %v500 = vrot.slane %v486, %v499
    %v501 = vcombine.low %v314, %v316
    %v502 = vcombine.high %v314, %v316
    %v504 = vunpack.c.l.s4 1983009808
    %v505 = vunpack.c.0.s8 %v504
    %v506 = vlaneseq
    %v507 = vshrl.u32 %v506, 7
    %v508 = vsub.s32 %v505, %v507
    %v509 = vrot.slane %v501, %v508
    %v511 = vunpack.c.l.s4 1983009808
    %v512 = vunpack.c.0.s8 %v511
    %v513 = vlaneseq
    %v514 = vshrl.u32 %v513, 7
    %v515 = vsub.s32 %v512, %v514
    %v516 = vrot.slane %v502, %v515
    %v517 = vcombine.low %v461, %v477
    %v518 = vcombine.high %v461, %v477
    %v520 = vunpack.c.l.s4 1934713408
    %v521 = vunpack.c.0.s8 %v520
    %v522 = vlaneseq
    %v523 = vshrl.u32 %v522, 7
    %v524 = vsub.s32 %v521, %v523
    %v525 = vrot.slane %v517, %v524
    %v527 = vunpack.c.l.s4 1934713408
    %v528 = vunpack.c.0.s8 %v527
    %v529 = vlaneseq
    %v530 = vshrl.u32 %v529, 7
    %v531 = vsub.s32 %v528, %v530
    %v532 = vrot.slane %v518, %v531
    %v533 = vcombine.low %v468, %v484
    %v534 = vcombine.high %v468, %v484
    %v536 = vunpack.c.l.s4 1934713408
    %v537 = vunpack.c.0.s8 %v536
    %v538 = vlaneseq
    %v539 = vshrl.u32 %v538, 7
    %v540 = vsub.s32 %v537, %v539
    %v541 = vrot.slane %v533, %v540
    %v543 = vunpack.c.l.s4 1934713408
    %v544 = vunpack.c.0.s8 %v543
    %v545 = vlaneseq
    %v546 = vshrl.u32 %v545, 7
    %v547 = vsub.s32 %v544, %v546
    %v548 = vrot.slane %v534, %v547
    %v549 = vcombine.low %v493, %v509
    %v550 = vcombine.high %v493, %v509
    %v552 = vunpack.c.l.s4 1934713408
    %v553 = vunpack.c.0.s8 %v552
    %v554 = vlaneseq
    %v555 = vshrl.u32 %v554, 7
    %v556 = vsub.s32 %v553, %v555
    %v557 = vrot.slane %v549, %v556
    %v559 = vunpack.c.l.s4 1934713408
    %v560 = vunpack.c.0.s8 %v559
    %v561 = vlaneseq
    %v562 = vshrl.u32 %v561, 7
    %v563 = vsub.s32 %v560, %v562
    %v564 = vrot.slane %v550, %v563
    %v565 = vcombine.low %v500, %v516
    %v566 = vcombine.high %v500, %v516
    %v568 = vunpack.c.l.s4 1934713408
    %v569 = vunpack.c.0.s8 %v568
    %v570 = vlaneseq
    %v571 = vshrl.u32 %v570, 7
    %v572 = vsub.s32 %v569, %v571
    %v573 = vrot.slane %v565, %v572
    %v575 = vunpack.c.l.s4 1934713408
    %v576 = vunpack.c.0.s8 %v575
    %v577 = vlaneseq
    %v578 = vshrl.u32 %v577, 7
    %v579 = vsub.s32 %v576, %v578
    %v580 = vrot.slane %v566, %v579
    %v581 = vcombine.low %v525, %v557
    %v582 = vcombine.high %v525, %v557
    %v583 = vcombine.low %v532, %v564
    %v584 = vcombine.high %v532, %v564
    %v585 = vcombine.low %v541, %v573
    %v586 = vcombine.high %v541, %v573
    %v587 = vcombine.low %v548, %v580
    %v588 = vcombine.high %v548, %v580
    %591 = vrot.lane.b32.xlu0 %v446, 16
    %v592 = vpop.permute.xlu0 %591
    %593 = vrot.lane.b32.xlu0 %v582, 16
    %v594 = vpop.permute.xlu0 %593
    %599 = vrot.lane.b32.xlu0 %v447, 32
    %v600 = vpop.permute.xlu0 %599
    %601 = vrot.lane.b32.xlu0 %v583, 32
    %v602 = vpop.permute.xlu0 %601
    %607 = vrot.lane.b32.xlu0 %v448, 48
    %v608 = vpop.permute.xlu0 %607
    %609 = vrot.lane.b32.xlu0 %v584, 48
    %v610 = vpop.permute.xlu0 %609
    %615 = vrot.lane.b32.xlu0 %v449, 64
    %v616 = vpop.permute.xlu0 %615
    %617 = vrot.lane.b32.xlu0 %v585, 64
    %v618 = vpop.permute.xlu0 %617
    %623 = vrot.lane.b32.xlu0 %v450, 80
    %v624 = vpop.permute.xlu0 %623
    %625 = vrot.lane.b32.xlu0 %v586, 80
    %v626 = vpop.permute.xlu0 %625
    %631 = vrot.lane.b32.xlu0 %v451, 96
    %v632 = vpop.permute.xlu0 %631
    %633 = vrot.lane.b32.xlu0 %v587, 96
    %v634 = vpop.permute.xlu0 %633
    %639 = vrot.lane.b32.xlu0 %v452, 112
    %v640 = vpop.permute.xlu0 %639
    %641 = vrot.lane.b32.xlu0 %v588, 112
    %v642 = vpop.permute.xlu0 %641
    %vm645 = vcmask 130048
    %v646 = vsel %vm645, %v445, %v592
    %v647 = vsel %vm645, %v581, %v594
    %vm648 = vcmask 261120
    %v649 = vsel %vm648, %v646, %v600
    %v650 = vsel %vm648, %v647, %v602
    %vm651 = vcmask 392192
    %v652 = vsel %vm651, %v649, %v608
    %v653 = vsel %vm651, %v650, %v610
    %vm654 = vcmask 523264
    %v655 = vsel %vm654, %v652, %v616
    %v656 = vsel %vm654, %v653, %v618
    %vm657 = vcmask 654336
    %v658 = vsel %vm657, %v655, %v624
    %v659 = vsel %vm657, %v656, %v626
    %vm660 = vcmask 785408
    %v661 = vsel %vm660, %v658, %v632
    %v662 = vsel %vm660, %v659, %v634
    %vm663 = vcmask 916480
    %v664 = vsel %vm663, %v661, %v640
    %v665 = vsel %vm663, %v662, %v642
    %v666 = vld [vmem:[%s1] sm:$0xff]
    %v667 = vld [vmem:[%s1 + $0x8] sm:$0xff]
    %v668 = vld [vmem:[%s1 + $0x10] sm:$0xff]
    %v670 = vsel %vm645, %v666, 0
    %v673 = vsel %vm645, %v667, 0
    %v676 = vsel %vm645, %v668, 0
    %678 = vmatprep.subr.mxu0 0.0
    %679 = vmatpush1.msra.mxu0 %v664
    %680 = vmatprep.subr.mxu0 0.0
    %681 = vmatpush1.msra.mxu0 %v665
    %682 = vmatprep.subr.mxu0 0.0
    %683 = vmatpush1.msra.mxu0 0.0
    %684 = vmatprep.subr.mxu0 0.0
    %685 = vmatpush1.msra.mxu0 0.0
    %686 = vmatprep.subr.mxu0 0.0
    %687 = vmatpush1.msra.mxu0 0.0
    %688 = vmatprep.subr.mxu0 0.0
    %689 = vmatpush1.msra.mxu0 0.0
    %690 = vmatprep.subr.mxu0 0.0
    %691 = vmatpush1.msra.mxu0 0.0
    %692 = vmatprep.subr.mxu0 0.0
    %693 = vmatpush1.msra.mxu0 0.0
    %694 = vmatprep.subr.mxu0 0.0
    %695 = vmatpush1.msra.mxu0 0.0
    %696 = vmatprep.subr.mxu0 0.0
    %697 = vmatpush1.msra.mxu0 0.0
    %698 = vmatprep.subr.mxu0 0.0
    %699 = vmatpush1.msra.mxu0 0.0
    %700 = vmatprep.subr.mxu0 0.0
    %701 = vmatpush1.msra.mxu0 0.0
    %702 = vmatprep.subr.mxu0 0.0
    %703 = vmatpush1.msra.mxu0 0.0
    %704 = vmatprep.subr.mxu0 0.0
    %705 = vmatpush1.msra.mxu0 0.0
    %706 = vmatprep.subr.mxu0 0.0
    %707 = vmatpush1.msra.mxu0 0.0
    %708 = vmatprep.subr.mxu0 0.0
    %709 = vmatpush1.msra.mxu0 0.0
    %710 = vmatprep.subr.mxu0 0.0
    %711 = vmatpush1.msra.mxu0 0.0
    %712 = vmatprep.subr.mxu0 0.0
    %713 = vmatpush1.msra.mxu0 0.0
    %714 = vmatprep.subr.mxu0 0.0
    %715 = vmatpush1.msra.mxu0 0.0
    %716 = vmatprep.subr.mxu0 0.0
    %717 = vmatpush1.msra.mxu0 0.0
    %718 = vmatprep.subr.mxu0 0.0
    %719 = vmatpush1.msra.mxu0 0.0
    %720 = vmatprep.subr.mxu0 0.0
    %721 = vmatpush1.msra.mxu0 0.0
    %722 = vmatprep.subr.mxu0 0.0
    %723 = vmatpush1.msra.mxu0 0.0
    %724 = vmatprep.subr.mxu0 0.0
    %725 = vmatpush1.msra.mxu0 0.0
    %726 = vmatprep.subr.mxu0 0.0
    %727 = vmatpush1.msra.mxu0 0.0
    %728 = vmatprep.subr.mxu0 0.0
    %729 = vmatpush1.msra.mxu0 0.0
    %730 = vmatprep.subr.mxu0 0.0
    %731 = vmatpush1.msra.mxu0 0.0
    %732 = vmatprep.subr.mxu0 0.0
    %733 = vmatpush1.msra.mxu0 0.0
    %734 = vmatprep.subr.mxu0 0.0
    %735 = vmatpush1.msra.mxu0 0.0
    %736 = vmatprep.subr.mxu0 0.0
    %737 = vmatpush1.msra.mxu0 0.0
    %738 = vmatprep.subr.mxu0 0.0
    %739 = vmatpush1.msra.mxu0 0.0
    %740 = vmatprep.subr.mxu0 0.0
    %741 = vmatpush1.msra.mxu0 0.0
    %742 = vmatprep.mubr.f32.mxu0 0.0
    %743 = vmatmul.mubr.f32.gmra.mrb[0].mxu0 %v670
    %v744 = vpop.f32.mrb[0].mxu0
    %v745 = vadd.f32 0.0, %v744
    %v746 = vpop.f32.mrb[0].mxu0
    %747 = vmatprep.mubr.f32.mxu0 0.0
    %748 = vmatmul.mubr.f32.gmra.mrb[0].mxu0 %v673
    %v749 = vpop.f32.mrb[0].mxu0
    %v750 = vadd.f32 0.0, %v749
    %v751 = vpop.f32.mrb[0].mxu0
    %752 = vmatprep.mubr.f32.mxu0 0.0
    %753 = vmatmul.mubr.f32.gmra.mrb[0].mxu0 %v676
    %v754 = vpop.f32.mrb[0].mxu0
    %v755 = vadd.f32 0.0, %v754
    %v756 = vpop.f32.mrb[0].mxu0
    %757 = vdwg.mxu0
    %761 = vrot.lane.b32.xlu0 %v745, 112
    %v762 = vpop.permute.xlu0 %761
    %763 = vrot.lane.b32.xlu0 %v750, 112
    %v764 = vpop.permute.xlu0 %763
    %765 = vrot.lane.b32.xlu0 %v755, 112
    %v766 = vpop.permute.xlu0 %765
    %770 = vrot.lane.b32.xlu0 %v745, 96
    %v771 = vpop.permute.xlu0 %770
    %772 = vrot.lane.b32.xlu0 %v750, 96
    %v773 = vpop.permute.xlu0 %772
    %774 = vrot.lane.b32.xlu0 %v755, 96
    %v775 = vpop.permute.xlu0 %774
    %779 = vrot.lane.b32.xlu0 %v745, 80
    %v780 = vpop.permute.xlu0 %779
    %781 = vrot.lane.b32.xlu0 %v750, 80
    %v782 = vpop.permute.xlu0 %781
    %783 = vrot.lane.b32.xlu0 %v755, 80
    %v784 = vpop.permute.xlu0 %783
    %788 = vrot.lane.b32.xlu0 %v745, 64
    %v789 = vpop.permute.xlu0 %788
    %790 = vrot.lane.b32.xlu0 %v750, 64
    %v791 = vpop.permute.xlu0 %790
    %792 = vrot.lane.b32.xlu0 %v755, 64
    %v793 = vpop.permute.xlu0 %792
    %797 = vrot.lane.b32.xlu0 %v745, 48
    %v798 = vpop.permute.xlu0 %797
    %799 = vrot.lane.b32.xlu0 %v750, 48
    %v800 = vpop.permute.xlu0 %799
    %801 = vrot.lane.b32.xlu0 %v755, 48
    %v802 = vpop.permute.xlu0 %801
    %806 = vrot.lane.b32.xlu0 %v745, 32
    %v807 = vpop.permute.xlu0 %806
    %808 = vrot.lane.b32.xlu0 %v750, 32
    %v809 = vpop.permute.xlu0 %808
    %810 = vrot.lane.b32.xlu0 %v755, 32
    %v811 = vpop.permute.xlu0 %810
    %815 = vrot.lane.b32.xlu0 %v745, 16
    %v816 = vpop.permute.xlu0 %815
    %817 = vrot.lane.b32.xlu0 %v750, 16
    %v818 = vpop.permute.xlu0 %817
    %819 = vrot.lane.b32.xlu0 %v755, 16
    %v820 = vpop.permute.xlu0 %819
    %v824 = vcombine.low %v745, %v771
    %v825 = vcombine.high %v745, %v771
    %v827 = vunpack.c.l.s4 1983009808
    %v828 = vunpack.c.0.s8 %v827
    %v829 = vlaneseq
    %v830 = vshrl.u32 %v829, 7
    %v831 = vsub.s32 %v828, %v830
    %v832 = vrot.slane %v824, %v831
    %v834 = vunpack.c.l.s4 1983009808
    %v835 = vunpack.c.0.s8 %v834
    %v836 = vlaneseq
    %v837 = vshrl.u32 %v836, 7
    %v838 = vsub.s32 %v835, %v837
    %v839 = vrot.slane %v825, %v838
    %v840 = vcombine.low %v762, %v780
    %v841 = vcombine.high %v762, %v780
    %v843 = vunpack.c.l.s4 1983009808
    %v844 = vunpack.c.0.s8 %v843
    %v845 = vlaneseq
    %v846 = vshrl.u32 %v845, 7
    %v847 = vsub.s32 %v844, %v846
    %v848 = vrot.slane %v840, %v847
    %v850 = vunpack.c.l.s4 1983009808
    %v851 = vunpack.c.0.s8 %v850
    %v852 = vlaneseq
    %v853 = vshrl.u32 %v852, 7
    %v854 = vsub.s32 %v851, %v853
    %v855 = vrot.slane %v841, %v854
    %v856 = vcombine.low %v789, %v807
    %v857 = vcombine.high %v789, %v807
    %v859 = vunpack.c.l.s4 1983009808
    %v860 = vunpack.c.0.s8 %v859
    %v861 = vlaneseq
    %v862 = vshrl.u32 %v861, 7
    %v863 = vsub.s32 %v860, %v862
    %v864 = vrot.slane %v856, %v863
    %v866 = vunpack.c.l.s4 1983009808
    %v867 = vunpack.c.0.s8 %v866
    %v868 = vlaneseq
    %v869 = vshrl.u32 %v868, 7
    %v870 = vsub.s32 %v867, %v869
    %v871 = vrot.slane %v857, %v870
    %v872 = vcombine.low %v798, %v816
    %v873 = vcombine.high %v798, %v816
    %v875 = vunpack.c.l.s4 1983009808
    %v876 = vunpack.c.0.s8 %v875
    %v877 = vlaneseq
    %v878 = vshrl.u32 %v877, 7
    %v879 = vsub.s32 %v876, %v878
    %v880 = vrot.slane %v872, %v879
    %v882 = vunpack.c.l.s4 1983009808
    %v883 = vunpack.c.0.s8 %v882
    %v884 = vlaneseq
    %v885 = vshrl.u32 %v884, 7
    %v886 = vsub.s32 %v883, %v885
    %v887 = vrot.slane %v873, %v886
    %v888 = vcombine.low %v832, %v848
    %v889 = vcombine.high %v832, %v848
    %v891 = vunpack.c.l.s4 1934713408
    %v892 = vunpack.c.0.s8 %v891
    %v893 = vlaneseq
    %v894 = vshrl.u32 %v893, 7
    %v895 = vsub.s32 %v892, %v894
    %v896 = vrot.slane %v888, %v895
    %v898 = vunpack.c.l.s4 1934713408
    %v899 = vunpack.c.0.s8 %v898
    %v900 = vlaneseq
    %v901 = vshrl.u32 %v900, 7
    %v902 = vsub.s32 %v899, %v901
    %v903 = vrot.slane %v889, %v902
    %v904 = vcombine.low %v839, %v855
    %v905 = vcombine.high %v839, %v855
    %v907 = vunpack.c.l.s4 1934713408
    %v908 = vunpack.c.0.s8 %v907
    %v909 = vlaneseq
    %v910 = vshrl.u32 %v909, 7
    %v911 = vsub.s32 %v908, %v910
    %v912 = vrot.slane %v904, %v911
    %v914 = vunpack.c.l.s4 1934713408
    %v915 = vunpack.c.0.s8 %v914
    %v916 = vlaneseq
    %v917 = vshrl.u32 %v916, 7
    %v918 = vsub.s32 %v915, %v917
    %v919 = vrot.slane %v905, %v918
    %v920 = vcombine.low %v864, %v880
    %v921 = vcombine.high %v864, %v880
    %v923 = vunpack.c.l.s4 1934713408
    %v924 = vunpack.c.0.s8 %v923
    %v925 = vlaneseq
    %v926 = vshrl.u32 %v925, 7
    %v927 = vsub.s32 %v924, %v926
    %v928 = vrot.slane %v920, %v927
    %v930 = vunpack.c.l.s4 1934713408
    %v931 = vunpack.c.0.s8 %v930
    %v932 = vlaneseq
    %v933 = vshrl.u32 %v932, 7
    %v934 = vsub.s32 %v931, %v933
    %v935 = vrot.slane %v921, %v934
    %v936 = vcombine.low %v871, %v887
    %v937 = vcombine.high %v871, %v887
    %v939 = vunpack.c.l.s4 1934713408
    %v940 = vunpack.c.0.s8 %v939
    %v941 = vlaneseq
    %v942 = vshrl.u32 %v941, 7
    %v943 = vsub.s32 %v940, %v942
    %v944 = vrot.slane %v936, %v943
    %v946 = vunpack.c.l.s4 1934713408
    %v947 = vunpack.c.0.s8 %v946
    %v948 = vlaneseq
    %v949 = vshrl.u32 %v948, 7
    %v950 = vsub.s32 %v947, %v949
    %v951 = vrot.slane %v937, %v950
    %v952 = vcombine.low %v896, %v928
    %v953 = vcombine.high %v896, %v928
    %v954 = vcombine.low %v903, %v935
    %v955 = vcombine.high %v903, %v935
    %v956 = vcombine.low %v912, %v944
    %v957 = vcombine.high %v912, %v944
    %v958 = vcombine.low %v919, %v951
    %v959 = vcombine.high %v919, %v951
    %v960 = vcombine.low %v750, %v773
    %v961 = vcombine.high %v750, %v773
    %v963 = vunpack.c.l.s4 1983009808
    %v964 = vunpack.c.0.s8 %v963
    %v965 = vlaneseq
    %v966 = vshrl.u32 %v965, 7
    %v967 = vsub.s32 %v964, %v966
    %v968 = vrot.slane %v960, %v967
    %v970 = vunpack.c.l.s4 1983009808
    %v971 = vunpack.c.0.s8 %v970
    %v972 = vlaneseq
    %v973 = vshrl.u32 %v972, 7
    %v974 = vsub.s32 %v971, %v973
    %v975 = vrot.slane %v961, %v974
    %v976 = vcombine.low %v764, %v782
    %v977 = vcombine.high %v764, %v782
    %v979 = vunpack.c.l.s4 1983009808
    %v980 = vunpack.c.0.s8 %v979
    %v981 = vlaneseq
    %v982 = vshrl.u32 %v981, 7
    %v983 = vsub.s32 %v980, %v982
    %v984 = vrot.slane %v976, %v983
    %v986 = vunpack.c.l.s4 1983009808
    %v987 = vunpack.c.0.s8 %v986
    %v988 = vlaneseq
    %v989 = vshrl.u32 %v988, 7
    %v990 = vsub.s32 %v987, %v989
    %v991 = vrot.slane %v977, %v990
    %v992 = vcombine.low %v791, %v809
    %v993 = vcombine.high %v791, %v809
    %v995 = vunpack.c.l.s4 1983009808
    %v996 = vunpack.c.0.s8 %v995
    %v997 = vlaneseq
    %v998 = vshrl.u32 %v997, 7
    %v999 = vsub.s32 %v996, %v998
    %v1000 = vrot.slane %v992, %v999
    %v1002 = vunpack.c.l.s4 1983009808
    %v1003 = vunpack.c.0.s8 %v1002
    %v1004 = vlaneseq
    %v1005 = vshrl.u32 %v1004, 7
    %v1006 = vsub.s32 %v1003, %v1005
    %v1007 = vrot.slane %v993, %v1006
    %v1008 = vcombine.low %v800, %v818
    %v1009 = vcombine.high %v800, %v818
    %v1011 = vunpack.c.l.s4 1983009808
    %v1012 = vunpack.c.0.s8 %v1011
    %v1013 = vlaneseq
    %v1014 = vshrl.u32 %v1013, 7
    %v1015 = vsub.s32 %v1012, %v1014
    %v1016 = vrot.slane %v1008, %v1015
    %v1018 = vunpack.c.l.s4 1983009808
    %v1019 = vunpack.c.0.s8 %v1018
    %v1020 = vlaneseq
    %v1021 = vshrl.u32 %v1020, 7
    %v1022 = vsub.s32 %v1019, %v1021
    %v1023 = vrot.slane %v1009, %v1022
    %v1024 = vcombine.low %v968, %v984
    %v1025 = vcombine.high %v968, %v984
    %v1027 = vunpack.c.l.s4 1934713408
    %v1028 = vunpack.c.0.s8 %v1027
    %v1029 = vlaneseq
    %v1030 = vshrl.u32 %v1029, 7
    %v1031 = vsub.s32 %v1028, %v1030
    %v1032 = vrot.slane %v1024, %v1031
    %v1034 = vunpack.c.l.s4 1934713408
    %v1035 = vunpack.c.0.s8 %v1034
    %v1036 = vlaneseq
    %v1037 = vshrl.u32 %v1036, 7
    %v1038 = vsub.s32 %v1035, %v1037
    %v1039 = vrot.slane %v1025, %v1038
    %v1040 = vcombine.low %v975, %v991
    %v1041 = vcombine.high %v975, %v991
    %v1043 = vunpack.c.l.s4 1934713408
    %v1044 = vunpack.c.0.s8 %v1043
    %v1045 = vlaneseq
    %v1046 = vshrl.u32 %v1045, 7
    %v1047 = vsub.s32 %v1044, %v1046
    %v1048 = vrot.slane %v1040, %v1047
    %v1050 = vunpack.c.l.s4 1934713408
    %v1051 = vunpack.c.0.s8 %v1050
    %v1052 = vlaneseq
    %v1053 = vshrl.u32 %v1052, 7
    %v1054 = vsub.s32 %v1051, %v1053
    %v1055 = vrot.slane %v1041, %v1054
    %v1056 = vcombine.low %v1000, %v1016
    %v1057 = vcombine.high %v1000, %v1016
    %v1059 = vunpack.c.l.s4 1934713408
    %v1060 = vunpack.c.0.s8 %v1059
    %v1061 = vlaneseq
    %v1062 = vshrl.u32 %v1061, 7
    %v1063 = vsub.s32 %v1060, %v1062
    %v1064 = vrot.slane %v1056, %v1063
    %v1066 = vunpack.c.l.s4 1934713408
    %v1067 = vunpack.c.0.s8 %v1066
    %v1068 = vlaneseq
    %v1069 = vshrl.u32 %v1068, 7
    %v1070 = vsub.s32 %v1067, %v1069
    %v1071 = vrot.slane %v1057, %v1070
    %v1072 = vcombine.low %v1007, %v1023
    %v1073 = vcombine.high %v1007, %v1023
    %v1075 = vunpack.c.l.s4 1934713408
    %v1076 = vunpack.c.0.s8 %v1075
    %v1077 = vlaneseq
    %v1078 = vshrl.u32 %v1077, 7
    %v1079 = vsub.s32 %v1076, %v1078
    %v1080 = vrot.slane %v1072, %v1079
    %v1082 = vunpack.c.l.s4 1934713408
    %v1083 = vunpack.c.0.s8 %v1082
    %v1084 = vlaneseq
    %v1085 = vshrl.u32 %v1084, 7
    %v1086 = vsub.s32 %v1083, %v1085
    %v1087 = vrot.slane %v1073, %v1086
    %v1088 = vcombine.low %v1032, %v1064
    %v1089 = vcombine.high %v1032, %v1064
    %v1090 = vcombine.low %v1039, %v1071
    %v1091 = vcombine.high %v1039, %v1071
    %v1092 = vcombine.low %v1048, %v1080
    %v1093 = vcombine.high %v1048, %v1080
    %v1094 = vcombine.low %v1055, %v1087
    %v1095 = vcombine.high %v1055, %v1087
    %v1096 = vcombine.low %v755, %v775
    %v1097 = vcombine.high %v755, %v775
    %v1099 = vunpack.c.l.s4 1983009808
    %v1100 = vunpack.c.0.s8 %v1099
    %v1101 = vlaneseq
    %v1102 = vshrl.u32 %v1101, 7
    %v1103 = vsub.s32 %v1100, %v1102
    %v1104 = vrot.slane %v1096, %v1103
    %v1106 = vunpack.c.l.s4 1983009808
    %v1107 = vunpack.c.0.s8 %v1106
    %v1108 = vlaneseq
    %v1109 = vshrl.u32 %v1108, 7
    %v1110 = vsub.s32 %v1107, %v1109
    %v1111 = vrot.slane %v1097, %v1110
    %v1112 = vcombine.low %v766, %v784
    %v1113 = vcombine.high %v766, %v784
    %v1115 = vunpack.c.l.s4 1983009808
    %v1116 = vunpack.c.0.s8 %v1115
    %v1117 = vlaneseq
    %v1118 = vshrl.u32 %v1117, 7
    %v1119 = vsub.s32 %v1116, %v1118
    %v1120 = vrot.slane %v1112, %v1119
    %v1122 = vunpack.c.l.s4 1983009808
    %v1123 = vunpack.c.0.s8 %v1122
    %v1124 = vlaneseq
    %v1125 = vshrl.u32 %v1124, 7
    %v1126 = vsub.s32 %v1123, %v1125
    %v1127 = vrot.slane %v1113, %v1126
    %v1128 = vcombine.low %v793, %v811
    %v1129 = vcombine.high %v793, %v811
    %v1131 = vunpack.c.l.s4 1983009808
    %v1132 = vunpack.c.0.s8 %v1131
    %v1133 = vlaneseq
    %v1134 = vshrl.u32 %v1133, 7
    %v1135 = vsub.s32 %v1132, %v1134
    %v1136 = vrot.slane %v1128, %v1135
    %v1138 = vunpack.c.l.s4 1983009808
    %v1139 = vunpack.c.0.s8 %v1138
    %v1140 = vlaneseq
    %v1141 = vshrl.u32 %v1140, 7
    %v1142 = vsub.s32 %v1139, %v1141
    %v1143 = vrot.slane %v1129, %v1142
    %v1144 = vcombine.low %v802, %v820
    %v1145 = vcombine.high %v802, %v820
    %v1147 = vunpack.c.l.s4 1983009808
    %v1148 = vunpack.c.0.s8 %v1147
    %v1149 = vlaneseq
    %v1150 = vshrl.u32 %v1149, 7
    %v1151 = vsub.s32 %v1148, %v1150
    %v1152 = vrot.slane %v1144, %v1151
    %v1154 = vunpack.c.l.s4 1983009808
    %v1155 = vunpack.c.0.s8 %v1154
    %v1156 = vlaneseq
    %v1157 = vshrl.u32 %v1156, 7
    %v1158 = vsub.s32 %v1155, %v1157
    %v1159 = vrot.slane %v1145, %v1158
    %v1160 = vcombine.low %v1104, %v1120
    %v1161 = vcombine.high %v1104, %v1120
    %v1163 = vunpack.c.l.s4 1934713408
    %v1164 = vunpack.c.0.s8 %v1163
    %v1165 = vlaneseq
    %v1166 = vshrl.u32 %v1165, 7
    %v1167 = vsub.s32 %v1164, %v1166
    %v1168 = vrot.slane %v1160, %v1167
    %v1170 = vunpack.c.l.s4 1934713408
    %v1171 = vunpack.c.0.s8 %v1170
    %v1172 = vlaneseq
    %v1173 = vshrl.u32 %v1172, 7
    %v1174 = vsub.s32 %v1171, %v1173
    %v1175 = vrot.slane %v1161, %v1174
    %v1176 = vcombine.low %v1111, %v1127
    %v1177 = vcombine.high %v1111, %v1127
    %v1179 = vunpack.c.l.s4 1934713408
    %v1180 = vunpack.c.0.s8 %v1179
    %v1181 = vlaneseq
    %v1182 = vshrl.u32 %v1181, 7
    %v1183 = vsub.s32 %v1180, %v1182
    %v1184 = vrot.slane %v1176, %v1183
    %v1186 = vunpack.c.l.s4 1934713408
    %v1187 = vunpack.c.0.s8 %v1186
    %v1188 = vlaneseq
    %v1189 = vshrl.u32 %v1188, 7
    %v1190 = vsub.s32 %v1187, %v1189
    %v1191 = vrot.slane %v1177, %v1190
    %v1192 = vcombine.low %v1136, %v1152
    %v1193 = vcombine.high %v1136, %v1152
    %v1195 = vunpack.c.l.s4 1934713408
    %v1196 = vunpack.c.0.s8 %v1195
    %v1197 = vlaneseq
    %v1198 = vshrl.u32 %v1197, 7
    %v1199 = vsub.s32 %v1196, %v1198
    %v1200 = vrot.slane %v1192, %v1199
    %v1202 = vunpack.c.l.s4 1934713408
    %v1203 = vunpack.c.0.s8 %v1202
    %v1204 = vlaneseq
    %v1205 = vshrl.u32 %v1204, 7
    %v1206 = vsub.s32 %v1203, %v1205
    %v1207 = vrot.slane %v1193, %v1206
    %v1208 = vcombine.low %v1143, %v1159
    %v1209 = vcombine.high %v1143, %v1159
    %v1211 = vunpack.c.l.s4 1934713408
    %v1212 = vunpack.c.0.s8 %v1211
    %v1213 = vlaneseq
    %v1214 = vshrl.u32 %v1213, 7
    %v1215 = vsub.s32 %v1212, %v1214
    %v1216 = vrot.slane %v1208, %v1215
    %v1218 = vunpack.c.l.s4 1934713408
    %v1219 = vunpack.c.0.s8 %v1218
    %v1220 = vlaneseq
    %v1221 = vshrl.u32 %v1220, 7
    %v1222 = vsub.s32 %v1219, %v1221
    %v1223 = vrot.slane %v1209, %v1222
    %v1224 = vcombine.low %v1168, %v1200
    %v1225 = vcombine.high %v1168, %v1200
    %v1226 = vcombine.low %v1175, %v1207
    %v1227 = vcombine.high %v1175, %v1207
    %v1228 = vcombine.low %v1184, %v1216
    %v1229 = vcombine.high %v1184, %v1216
    %v1230 = vcombine.low %v1191, %v1223
    %v1231 = vcombine.high %v1191, %v1223
    %v1232 = vcombine.low %v952, %v954
    %v1233 = vcombine.high %v952, %v954
    %v1235 = vunpack.c.l.s4 1983009808
    %v1236 = vunpack.c.0.s8 %v1235
    %v1237 = vlaneseq
    %v1238 = vshrl.u32 %v1237, 7
    %v1239 = vsub.s32 %v1236, %v1238
    %v1240 = vrot.slane %v1232, %v1239
    %v1242 = vunpack.c.l.s4 1983009808
    %v1243 = vunpack.c.0.s8 %v1242
    %v1244 = vlaneseq
    %v1245 = vshrl.u32 %v1244, 7
    %v1246 = vsub.s32 %v1243, %v1245
    %v1247 = vrot.slane %v1233, %v1246
    %v1248 = vcombine.low %v953, %v955
    %v1249 = vcombine.high %v953, %v955
    %v1251 = vunpack.c.l.s4 1983009808
    %v1252 = vunpack.c.0.s8 %v1251
    %v1253 = vlaneseq
    %v1254 = vshrl.u32 %v1253, 7
    %v1255 = vsub.s32 %v1252, %v1254
    %v1256 = vrot.slane %v1248, %v1255
    %v1258 = vunpack.c.l.s4 1983009808
    %v1259 = vunpack.c.0.s8 %v1258
    %v1260 = vlaneseq
    %v1261 = vshrl.u32 %v1260, 7
    %v1262 = vsub.s32 %v1259, %v1261
    %v1263 = vrot.slane %v1249, %v1262
    %v1264 = vcombine.low %v956, %v958
    %v1265 = vcombine.high %v956, %v958
    %v1267 = vunpack.c.l.s4 1983009808
    %v1268 = vunpack.c.0.s8 %v1267
    %v1269 = vlaneseq
    %v1270 = vshrl.u32 %v1269, 7
    %v1271 = vsub.s32 %v1268, %v1270
    %v1272 = vrot.slane %v1264, %v1271
    %v1274 = vunpack.c.l.s4 1983009808
    %v1275 = vunpack.c.0.s8 %v1274
    %v1276 = vlaneseq
    %v1277 = vshrl.u32 %v1276, 7
    %v1278 = vsub.s32 %v1275, %v1277
    %v1279 = vrot.slane %v1265, %v1278
    %v1280 = vcombine.low %v957, %v959
    %v1281 = vcombine.high %v957, %v959
    %v1283 = vunpack.c.l.s4 1983009808
    %v1284 = vunpack.c.0.s8 %v1283
    %v1285 = vlaneseq
    %v1286 = vshrl.u32 %v1285, 7
    %v1287 = vsub.s32 %v1284, %v1286
    %v1288 = vrot.slane %v1280, %v1287
    %v1290 = vunpack.c.l.s4 1983009808
    %v1291 = vunpack.c.0.s8 %v1290
    %v1292 = vlaneseq
    %v1293 = vshrl.u32 %v1292, 7
    %v1294 = vsub.s32 %v1291, %v1293
    %v1295 = vrot.slane %v1281, %v1294
    %v1296 = vcombine.low %v1240, %v1256
    %v1297 = vcombine.high %v1240, %v1256
    %v1299 = vunpack.c.l.s4 1934713408
    %v1300 = vunpack.c.0.s8 %v1299
    %v1301 = vlaneseq
    %v1302 = vshrl.u32 %v1301, 7
    %v1303 = vsub.s32 %v1300, %v1302
    %v1304 = vrot.slane %v1296, %v1303
    %v1306 = vunpack.c.l.s4 1934713408
    %v1307 = vunpack.c.0.s8 %v1306
    %v1308 = vlaneseq
    %v1309 = vshrl.u32 %v1308, 7
    %v1310 = vsub.s32 %v1307, %v1309
    %v1311 = vrot.slane %v1297, %v1310
    %v1312 = vcombine.low %v1247, %v1263
    %v1313 = vcombine.high %v1247, %v1263
    %v1315 = vunpack.c.l.s4 1934713408
    %v1316 = vunpack.c.0.s8 %v1315
    %v1317 = vlaneseq
    %v1318 = vshrl.u32 %v1317, 7
    %v1319 = vsub.s32 %v1316, %v1318
    %v1320 = vrot.slane %v1312, %v1319
    %v1322 = vunpack.c.l.s4 1934713408
    %v1323 = vunpack.c.0.s8 %v1322
    %v1324 = vlaneseq
    %v1325 = vshrl.u32 %v1324, 7
    %v1326 = vsub.s32 %v1323, %v1325
    %v1327 = vrot.slane %v1313, %v1326
    %v1328 = vcombine.low %v1272, %v1288
    %v1329 = vcombine.high %v1272, %v1288
    %v1331 = vunpack.c.l.s4 1934713408
    %v1332 = vunpack.c.0.s8 %v1331
    %v1333 = vlaneseq
    %v1334 = vshrl.u32 %v1333, 7
    %v1335 = vsub.s32 %v1332, %v1334
    %v1336 = vrot.slane %v1328, %v1335
    %v1338 = vunpack.c.l.s4 1934713408
    %v1339 = vunpack.c.0.s8 %v1338
    %v1340 = vlaneseq
    %v1341 = vshrl.u32 %v1340, 7
    %v1342 = vsub.s32 %v1339, %v1341
    %v1343 = vrot.slane %v1329, %v1342
    %v1344 = vcombine.low %v1279, %v1295
    %v1345 = vcombine.high %v1279, %v1295
    %v1347 = vunpack.c.l.s4 1934713408
    %v1348 = vunpack.c.0.s8 %v1347
    %v1349 = vlaneseq
    %v1350 = vshrl.u32 %v1349, 7
    %v1351 = vsub.s32 %v1348, %v1350
    %v1352 = vrot.slane %v1344, %v1351
    %v1354 = vunpack.c.l.s4 1934713408
    %v1355 = vunpack.c.0.s8 %v1354
    %v1356 = vlaneseq
    %v1357 = vshrl.u32 %v1356, 7
    %v1358 = vsub.s32 %v1355, %v1357
    %v1359 = vrot.slane %v1345, %v1358
    %v1360 = vcombine.low %v1304, %v1336
    %v1361 = vcombine.high %v1304, %v1336
    %v1362 = vcombine.low %v1311, %v1343
    %v1363 = vcombine.high %v1311, %v1343
    %v1364 = vcombine.low %v1320, %v1352
    %v1365 = vcombine.high %v1320, %v1352
    %v1366 = vcombine.low %v1327, %v1359
    %v1367 = vcombine.high %v1327, %v1359
    %v1368 = vcombine.low %v1088, %v1090
    %v1369 = vcombine.high %v1088, %v1090
    %v1371 = vunpack.c.l.s4 1983009808
    %v1372 = vunpack.c.0.s8 %v1371
    %v1373 = vlaneseq
    %v1374 = vshrl.u32 %v1373, 7
    %v1375 = vsub.s32 %v1372, %v1374
    %v1376 = vrot.slane %v1368, %v1375
    %v1378 = vunpack.c.l.s4 1983009808
    %v1379 = vunpack.c.0.s8 %v1378
    %v1380 = vlaneseq
    %v1381 = vshrl.u32 %v1380, 7
    %v1382 = vsub.s32 %v1379, %v1381
    %v1383 = vrot.slane %v1369, %v1382
    %v1384 = vcombine.low %v1089, %v1091
    %v1385 = vcombine.high %v1089, %v1091
    %v1387 = vunpack.c.l.s4 1983009808
    %v1388 = vunpack.c.0.s8 %v1387
    %v1389 = vlaneseq
    %v1390 = vshrl.u32 %v1389, 7
    %v1391 = vsub.s32 %v1388, %v1390
    %v1392 = vrot.slane %v1384, %v1391
    %v1394 = vunpack.c.l.s4 1983009808
    %v1395 = vunpack.c.0.s8 %v1394
    %v1396 = vlaneseq
    %v1397 = vshrl.u32 %v1396, 7
    %v1398 = vsub.s32 %v1395, %v1397
    %v1399 = vrot.slane %v1385, %v1398
    %v1400 = vcombine.low %v1092, %v1094
    %v1401 = vcombine.high %v1092, %v1094
    %v1403 = vunpack.c.l.s4 1983009808
    %v1404 = vunpack.c.0.s8 %v1403
    %v1405 = vlaneseq
    %v1406 = vshrl.u32 %v1405, 7
    %v1407 = vsub.s32 %v1404, %v1406
    %v1408 = vrot.slane %v1400, %v1407
    %v1410 = vunpack.c.l.s4 1983009808
    %v1411 = vunpack.c.0.s8 %v1410
    %v1412 = vlaneseq
    %v1413 = vshrl.u32 %v1412, 7
    %v1414 = vsub.s32 %v1411, %v1413
    %v1415 = vrot.slane %v1401, %v1414
    %v1416 = vcombine.low %v1093, %v1095
    %v1417 = vcombine.high %v1093, %v1095
    %v1419 = vunpack.c.l.s4 1983009808
    %v1420 = vunpack.c.0.s8 %v1419
    %v1421 = vlaneseq
    %v1422 = vshrl.u32 %v1421, 7
    %v1423 = vsub.s32 %v1420, %v1422
    %v1424 = vrot.slane %v1416, %v1423
    %v1426 = vunpack.c.l.s4 1983009808
    %v1427 = vunpack.c.0.s8 %v1426
    %v1428 = vlaneseq
    %v1429 = vshrl.u32 %v1428, 7
    %v1430 = vsub.s32 %v1427, %v1429
    %v1431 = vrot.slane %v1417, %v1430
    %v1432 = vcombine.low %v1376, %v1392
    %v1433 = vcombine.high %v1376, %v1392
    %v1435 = vunpack.c.l.s4 1934713408
    %v1436 = vunpack.c.0.s8 %v1435
    %v1437 = vlaneseq
    %v1438 = vshrl.u32 %v1437, 7
    %v1439 = vsub.s32 %v1436, %v1438
    %v1440 = vrot.slane %v1432, %v1439
    %v1442 = vunpack.c.l.s4 1934713408
    %v1443 = vunpack.c.0.s8 %v1442
    %v1444 = vlaneseq
    %v1445 = vshrl.u32 %v1444, 7
    %v1446 = vsub.s32 %v1443, %v1445
    %v1447 = vrot.slane %v1433, %v1446
    %v1448 = vcombine.low %v1383, %v1399
    %v1449 = vcombine.high %v1383, %v1399
    %v1451 = vunpack.c.l.s4 1934713408
    %v1452 = vunpack.c.0.s8 %v1451
    %v1453 = vlaneseq
    %v1454 = vshrl.u32 %v1453, 7
    %v1455 = vsub.s32 %v1452, %v1454
    %v1456 = vrot.slane %v1448, %v1455
    %v1458 = vunpack.c.l.s4 1934713408
    %v1459 = vunpack.c.0.s8 %v1458
    %v1460 = vlaneseq
    %v1461 = vshrl.u32 %v1460, 7
    %v1462 = vsub.s32 %v1459, %v1461
    %v1463 = vrot.slane %v1449, %v1462
    %v1464 = vcombine.low %v1408, %v1424
    %v1465 = vcombine.high %v1408, %v1424
    %v1467 = vunpack.c.l.s4 1934713408
    %v1468 = vunpack.c.0.s8 %v1467
    %v1469 = vlaneseq
    %v1470 = vshrl.u32 %v1469, 7
    %v1471 = vsub.s32 %v1468, %v1470
    %v1472 = vrot.slane %v1464, %v1471
    %v1474 = vunpack.c.l.s4 1934713408
    %v1475 = vunpack.c.0.s8 %v1474
    %v1476 = vlaneseq
    %v1477 = vshrl.u32 %v1476, 7
    %v1478 = vsub.s32 %v1475, %v1477
    %v1479 = vrot.slane %v1465, %v1478
    %v1480 = vcombine.low %v1415, %v1431
    %v1481 = vcombine.high %v1415, %v1431
    %v1483 = vunpack.c.l.s4 1934713408
    %v1484 = vunpack.c.0.s8 %v1483
    %v1485 = vlaneseq
    %v1486 = vshrl.u32 %v1485, 7
    %v1487 = vsub.s32 %v1484, %v1486
    %v1488 = vrot.slane %v1480, %v1487
    %v1490 = vunpack.c.l.s4 1934713408
    %v1491 = vunpack.c.0.s8 %v1490
    %v1492 = vlaneseq
    %v1493 = vshrl.u32 %v1492, 7
    %v1494 = vsub.s32 %v1491, %v1493
    %v1495 = vrot.slane %v1481, %v1494
    %v1496 = vcombine.low %v1440, %v1472
    %v1497 = vcombine.high %v1440, %v1472
    %v1498 = vcombine.low %v1447, %v1479
    %v1499 = vcombine.high %v1447, %v1479
    %v1500 = vcombine.low %v1456, %v1488
    %v1501 = vcombine.high %v1456, %v1488
    %v1502 = vcombine.low %v1463, %v1495
    %v1503 = vcombine.high %v1463, %v1495
    %v1504 = vcombine.low %v1224, %v1226
    %v1505 = vcombine.high %v1224, %v1226
    %v1507 = vunpack.c.l.s4 1983009808
    %v1508 = vunpack.c.0.s8 %v1507
    %v1509 = vlaneseq
    %v1510 = vshrl.u32 %v1509, 7
    %v1511 = vsub.s32 %v1508, %v1510
    %v1512 = vrot.slane %v1504, %v1511
    %v1514 = vunpack.c.l.s4 1983009808
    %v1515 = vunpack.c.0.s8 %v1514
    %v1516 = vlaneseq
    %v1517 = vshrl.u32 %v1516, 7
    %v1518 = vsub.s32 %v1515, %v1517
    %v1519 = vrot.slane %v1505, %v1518
    %v1520 = vcombine.low %v1225, %v1227
    %v1521 = vcombine.high %v1225, %v1227
    %v1523 = vunpack.c.l.s4 1983009808
    %v1524 = vunpack.c.0.s8 %v1523
    %v1525 = vlaneseq
    %v1526 = vshrl.u32 %v1525, 7
    %v1527 = vsub.s32 %v1524, %v1526
    %v1528 = vrot.slane %v1520, %v1527
    %v1530 = vunpack.c.l.s4 1983009808
    %v1531 = vunpack.c.0.s8 %v1530
    %v1532 = vlaneseq
    %v1533 = vshrl.u32 %v1532, 7
    %v1534 = vsub.s32 %v1531, %v1533
    %v1535 = vrot.slane %v1521, %v1534
    %v1536 = vcombine.low %v1228, %v1230
    %v1537 = vcombine.high %v1228, %v1230
    %v1539 = vunpack.c.l.s4 1983009808
    %v1540 = vunpack.c.0.s8 %v1539
    %v1541 = vlaneseq
    %v1542 = vshrl.u32 %v1541, 7
    %v1543 = vsub.s32 %v1540, %v1542
    %v1544 = vrot.slane %v1536, %v1543
    %v1546 = vunpack.c.l.s4 1983009808
    %v1547 = vunpack.c.0.s8 %v1546
    %v1548 = vlaneseq
    %v1549 = vshrl.u32 %v1548, 7
    %v1550 = vsub.s32 %v1547, %v1549
    %v1551 = vrot.slane %v1537, %v1550
    %v1552 = vcombine.low %v1229, %v1231
    %v1553 = vcombine.high %v1229, %v1231
    %v1555 = vunpack.c.l.s4 1983009808
    %v1556 = vunpack.c.0.s8 %v1555
    %v1557 = vlaneseq
    %v1558 = vshrl.u32 %v1557, 7
    %v1559 = vsub.s32 %v1556, %v1558
    %v1560 = vrot.slane %v1552, %v1559
    %v1562 = vunpack.c.l.s4 1983009808
    %v1563 = vunpack.c.0.s8 %v1562
    %v1564 = vlaneseq
    %v1565 = vshrl.u32 %v1564, 7
    %v1566 = vsub.s32 %v1563, %v1565
    %v1567 = vrot.slane %v1553, %v1566
    %v1568 = vcombine.low %v1512, %v1528
    %v1569 = vcombine.high %v1512, %v1528
    %v1571 = vunpack.c.l.s4 1934713408
    %v1572 = vunpack.c.0.s8 %v1571
    %v1573 = vlaneseq
    %v1574 = vshrl.u32 %v1573, 7
    %v1575 = vsub.s32 %v1572, %v1574
    %v1576 = vrot.slane %v1568, %v1575
    %v1578 = vunpack.c.l.s4 1934713408
    %v1579 = vunpack.c.0.s8 %v1578
    %v1580 = vlaneseq
    %v1581 = vshrl.u32 %v1580, 7
    %v1582 = vsub.s32 %v1579, %v1581
    %v1583 = vrot.slane %v1569, %v1582
    %v1584 = vcombine.low %v1519, %v1535
    %v1585 = vcombine.high %v1519, %v1535
    %v1587 = vunpack.c.l.s4 1934713408
    %v1588 = vunpack.c.0.s8 %v1587
    %v1589 = vlaneseq
    %v1590 = vshrl.u32 %v1589, 7
    %v1591 = vsub.s32 %v1588, %v1590
    %v1592 = vrot.slane %v1584, %v1591
    %v1594 = vunpack.c.l.s4 1934713408
    %v1595 = vunpack.c.0.s8 %v1594
    %v1596 = vlaneseq
    %v1597 = vshrl.u32 %v1596, 7
    %v1598 = vsub.s32 %v1595, %v1597
    %v1599 = vrot.slane %v1585, %v1598
    %v1600 = vcombine.low %v1544, %v1560
    %v1601 = vcombine.high %v1544, %v1560
    %v1603 = vunpack.c.l.s4 1934713408
    %v1604 = vunpack.c.0.s8 %v1603
    %v1605 = vlaneseq
    %v1606 = vshrl.u32 %v1605, 7
    %v1607 = vsub.s32 %v1604, %v1606
    %v1608 = vrot.slane %v1600, %v1607
    %v1610 = vunpack.c.l.s4 1934713408
    %v1611 = vunpack.c.0.s8 %v1610
    %v1612 = vlaneseq
    %v1613 = vshrl.u32 %v1612, 7
    %v1614 = vsub.s32 %v1611, %v1613
    %v1615 = vrot.slane %v1601, %v1614
    %v1616 = vcombine.low %v1551, %v1567
    %v1617 = vcombine.high %v1551, %v1567
    %v1619 = vunpack.c.l.s4 1934713408
    %v1620 = vunpack.c.0.s8 %v1619
    %v1621 = vlaneseq
    %v1622 = vshrl.u32 %v1621, 7
    %v1623 = vsub.s32 %v1620, %v1622
    %v1624 = vrot.slane %v1616, %v1623
    %v1626 = vunpack.c.l.s4 1934713408
    %v1627 = vunpack.c.0.s8 %v1626
    %v1628 = vlaneseq
    %v1629 = vshrl.u32 %v1628, 7
    %v1630 = vsub.s32 %v1627, %v1629
    %v1631 = vrot.slane %v1617, %v1630
    %v1632 = vcombine.low %v1576, %v1608
    %v1633 = vcombine.high %v1576, %v1608
    %v1634 = vcombine.low %v1583, %v1615
    %v1635 = vcombine.high %v1583, %v1615
    %v1636 = vcombine.low %v1592, %v1624
    %v1637 = vcombine.high %v1592, %v1624
    %v1638 = vcombine.low %v1599, %v1631
    %v1639 = vcombine.high %v1599, %v1631
    %v1640 = vld [vmem:[%s2] sm:$0xff]
    %v1641 = vld [vmem:[%s2 + $0x8] sm:$0xff]
    %v1643 = vsel %vm645, %v1360, 0
    %v1646 = vsel %vm645, %v1496, 0
    %v1649 = vsel %vm645, %v1632, 0
    %v1652 = vsel %vm645, %v1361, 0
    %v1655 = vsel %vm645, %v1497, 0
    %v1658 = vsel %vm645, %v1633, 0
    %v1661 = vsel %vm645, %v1362, 0
    %v1664 = vsel %vm645, %v1498, 0
    %v1667 = vsel %vm645, %v1634, 0
    %v1670 = vsel %vm645, %v1363, 0
    %v1673 = vsel %vm645, %v1499, 0
    %v1676 = vsel %vm645, %v1635, 0
    %v1679 = vsel %vm645, %v1364, 0
    %v1682 = vsel %vm645, %v1500, 0
    %v1685 = vsel %vm645, %v1636, 0
    %v1688 = vsel %vm645, %v1365, 0
    %v1691 = vsel %vm645, %v1501, 0
    %v1694 = vsel %vm645, %v1637, 0
    %v1697 = vsel %vm645, %v1366, 0
    %v1700 = vsel %vm645, %v1502, 0
    %v1703 = vsel %vm645, %v1638, 0
    %v1706 = vsel %vm645, %v1367, 0
    %v1709 = vsel %vm645, %v1503, 0
    %v1712 = vsel %vm645, %v1639, 0
    %1714 = vmatprep.subr.mxu0 0.0
    %1715 = vmatpush1.msra.mxu0 %v1640
    %1716 = vmatprep.subr.mxu0 0.0
    %1717 = vmatpush1.msra.mxu0 %v1641
    %1718 = vmatprep.subr.mxu0 0.0
    %1719 = vmatpush1.msra.mxu0 0.0
    %1720 = vmatprep.subr.mxu0 0.0
    %1721 = vmatpush1.msra.mxu0 0.0
    %1722 = vmatprep.subr.mxu0 0.0
    %1723 = vmatpush1.msra.mxu0 0.0
    %1724 = vmatprep.subr.mxu0 0.0
    %1725 = vmatpush1.msra.mxu0 0.0
    %1726 = vmatprep.subr.mxu0 0.0
    %1727 = vmatpush1.msra.mxu0 0.0
    %1728 = vmatprep.subr.mxu0 0.0
    %1729 = vmatpush1.msra.mxu0 0.0
    %1730 = vmatprep.subr.mxu0 0.0
    %1731 = vmatpush1.msra.mxu0 0.0
    %1732 = vmatprep.subr.mxu0 0.0
    %1733 = vmatpush1.msra.mxu0 0.0
    %1734 = vmatprep.subr.mxu0 0.0
    %1735 = vmatpush1.msra.mxu0 0.0
    %1736 = vmatprep.subr.mxu0 0.0
    %1737 = vmatpush1.msra.mxu0 0.0
    %1738 = vmatprep.subr.mxu0 0.0
    %1739 = vmatpush1.msra.mxu0 0.0
    %1740 = vmatprep.subr.mxu0 0.0
    %1741 = vmatpush1.msra.mxu0 0.0
    %1742 = vmatprep.subr.mxu0 0.0
    %1743 = vmatpush1.msra.mxu0 0.0
    %1744 = vmatprep.subr.mxu0 0.0
    %1745 = vmatpush1.msra.mxu0 0.0
    %1746 = vmatprep.subr.mxu0 0.0
    %1747 = vmatpush1.msra.mxu0 0.0
    %1748 = vmatprep.subr.mxu0 0.0
    %1749 = vmatpush1.msra.mxu0 0.0
    %1750 = vmatprep.subr.mxu0 0.0
    %1751 = vmatpush1.msra.mxu0 0.0
    %1752 = vmatprep.subr.mxu0 0.0
    %1753 = vmatpush1.msra.mxu0 0.0
    %1754 = vmatprep.subr.mxu0 0.0
    %1755 = vmatpush1.msra.mxu0 0.0
    %1756 = vmatprep.subr.mxu0 0.0
    %1757 = vmatpush1.msra.mxu0 0.0
    %1758 = vmatprep.subr.mxu0 0.0
    %1759 = vmatpush1.msra.mxu0 0.0
    %1760 = vmatprep.subr.mxu0 0.0
    %1761 = vmatpush1.msra.mxu0 0.0
    %1762 = vmatprep.subr.mxu0 0.0
    %1763 = vmatpush1.msra.mxu0 0.0
    %1764 = vmatprep.subr.mxu0 0.0
    %1765 = vmatpush1.msra.mxu0 0.0
    %1766 = vmatprep.subr.mxu0 0.0
    %1767 = vmatpush1.msra.mxu0 0.0
    %1768 = vmatprep.subr.mxu0 0.0
    %1769 = vmatpush1.msra.mxu0 0.0
    %1770 = vmatprep.subr.mxu0 0.0
    %1771 = vmatpush1.msra.mxu0 0.0
    %1772 = vmatprep.subr.mxu0 0.0
    %1773 = vmatpush1.msra.mxu0 0.0
    %1774 = vmatprep.subr.mxu0 0.0
    %1775 = vmatpush1.msra.mxu0 0.0
    %1776 = vmatprep.subr.mxu0 0.0
    %1777 = vmatpush1.msra.mxu0 0.0
    %1778 = vmatprep.mubr.f32.mxu0 0.0
    %1779 = vmatmul.mubr.f32.gmra.mrb[0].mxu0 %v1643
    %v1780 = vpop.f32.mrb[0].mxu0
    %v1781 = vadd.f32 0.0, %v1780
    %v1782 = vpop.f32.mrb[0].mxu0
    %1783 = vmatprep.mubr.f32.mxu0 0.0
    %1784 = vmatmul.mubr.f32.gmra.mrb[0].mxu0 %v1646
    %v1785 = vpop.f32.mrb[0].mxu0
    %v1786 = vadd.f32 0.0, %v1785
    %v1787 = vpop.f32.mrb[0].mxu0
    %1788 = vmatprep.mubr.f32.mxu0 0.0
    %1789 = vmatmul.mubr.f32.gmra.mrb[0].mxu0 %v1649
    %v1790 = vpop.f32.mrb[0].mxu0
    %v1791 = vadd.f32 0.0, %v1790
    %v1792 = vpop.f32.mrb[0].mxu0
    %1793 = vmatprep.mubr.f32.mxu0 0.0
    %1794 = vmatmul.mubr.f32.gmra.mrb[0].mxu0 %v1652
    %v1795 = vpop.f32.mrb[0].mxu0
    %v1796 = vadd.f32 0.0, %v1795
    %v1797 = vpop.f32.mrb[0].mxu0
    %1798 = vmatprep.mubr.f32.mxu0 0.0
    %1799 = vmatmul.mubr.f32.gmra.mrb[0].mxu0 %v1655
    %v1800 = vpop.f32.mrb[0].mxu0
    %v1801 = vadd.f32 0.0, %v1800
    %v1802 = vpop.f32.mrb[0].mxu0
    %1803 = vmatprep.mubr.f32.mxu0 0.0
    %1804 = vmatmul.mubr.f32.gmra.mrb[0].mxu0 %v1658
    %v1805 = vpop.f32.mrb[0].mxu0
    %v1806 = vadd.f32 0.0, %v1805
    %v1807 = vpop.f32.mrb[0].mxu0
    %1808 = vmatprep.mubr.f32.mxu0 0.0
    %1809 = vmatmul.mubr.f32.gmra.mrb[0].mxu0 %v1661
    %v1810 = vpop.f32.mrb[0].mxu0
    %v1811 = vadd.f32 0.0, %v1810
    %v1812 = vpop.f32.mrb[0].mxu0
    %1813 = vmatprep.mubr.f32.mxu0 0.0
    %1814 = vmatmul.mubr.f32.gmra.mrb[0].mxu0 %v1664
    %v1815 = vpop.f32.mrb[0].mxu0
    %v1816 = vadd.f32 0.0, %v1815
    %v1817 = vpop.f32.mrb[0].mxu0
    %1818 = vmatprep.mubr.f32.mxu0 0.0
    %1819 = vmatmul.mubr.f32.gmra.mrb[0].mxu0 %v1667
    %v1820 = vpop.f32.mrb[0].mxu0
    %v1821 = vadd.f32 0.0, %v1820
    %v1822 = vpop.f32.mrb[0].mxu0
    %1823 = vmatprep.mubr.f32.mxu0 0.0
    %1824 = vmatmul.mubr.f32.gmra.mrb[0].mxu0 %v1670
    %v1825 = vpop.f32.mrb[0].mxu0
    %v1826 = vadd.f32 0.0, %v1825
    %v1827 = vpop.f32.mrb[0].mxu0
    %1828 = vmatprep.mubr.f32.mxu0 0.0
    %1829 = vmatmul.mubr.f32.gmra.mrb[0].mxu0 %v1673
    %v1830 = vpop.f32.mrb[0].mxu0
    %v1831 = vadd.f32 0.0, %v1830
    %v1832 = vpop.f32.mrb[0].mxu0
    %1833 = vmatprep.mubr.f32.mxu0 0.0
    %1834 = vmatmul.mubr.f32.gmra.mrb[0].mxu0 %v1676
    %v1835 = vpop.f32.mrb[0].mxu0
    %v1836 = vadd.f32 0.0, %v1835
    %v1837 = vpop.f32.mrb[0].mxu0
    %1838 = vmatprep.mubr.f32.mxu0 0.0
    %1839 = vmatmul.mubr.f32.gmra.mrb[0].mxu0 %v1679
    %v1840 = vpop.f32.mrb[0].mxu0
    %v1841 = vadd.f32 0.0, %v1840
    %v1842 = vpop.f32.mrb[0].mxu0
    %1843 = vmatprep.mubr.f32.mxu0 0.0
    %1844 = vmatmul.mubr.f32.gmra.mrb[0].mxu0 %v1682
    %v1845 = vpop.f32.mrb[0].mxu0
    %v1846 = vadd.f32 0.0, %v1845
    %v1847 = vpop.f32.mrb[0].mxu0
    %1848 = vmatprep.mubr.f32.mxu0 0.0
    %1849 = vmatmul.mubr.f32.gmra.mrb[0].mxu0 %v1685
    %v1850 = vpop.f32.mrb[0].mxu0
    %v1851 = vadd.f32 0.0, %v1850
    %v1852 = vpop.f32.mrb[0].mxu0
    %1853 = vmatprep.mubr.f32.mxu0 0.0
    %1854 = vmatmul.mubr.f32.gmra.mrb[0].mxu0 %v1688
    %v1855 = vpop.f32.mrb[0].mxu0
    %v1856 = vadd.f32 0.0, %v1855
    %v1857 = vpop.f32.mrb[0].mxu0
    %1858 = vmatprep.mubr.f32.mxu0 0.0
    %1859 = vmatmul.mubr.f32.gmra.mrb[0].mxu0 %v1691
    %v1860 = vpop.f32.mrb[0].mxu0
    %v1861 = vadd.f32 0.0, %v1860
    %v1862 = vpop.f32.mrb[0].mxu0
    %1863 = vmatprep.mubr.f32.mxu0 0.0
    %1864 = vmatmul.mubr.f32.gmra.mrb[0].mxu0 %v1694
    %v1865 = vpop.f32.mrb[0].mxu0
    %v1866 = vadd.f32 0.0, %v1865
    %v1867 = vpop.f32.mrb[0].mxu0
    %1868 = vmatprep.mubr.f32.mxu0 0.0
    %1869 = vmatmul.mubr.f32.gmra.mrb[0].mxu0 %v1697
    %v1870 = vpop.f32.mrb[0].mxu0
    %v1871 = vadd.f32 0.0, %v1870
    %v1872 = vpop.f32.mrb[0].mxu0
    %1873 = vmatprep.mubr.f32.mxu0 0.0
    %1874 = vmatmul.mubr.f32.gmra.mrb[0].mxu0 %v1700
    %v1875 = vpop.f32.mrb[0].mxu0
    %v1876 = vadd.f32 0.0, %v1875
    %v1877 = vpop.f32.mrb[0].mxu0
    %1878 = vmatprep.mubr.f32.mxu0 0.0
    %1879 = vmatmul.mubr.f32.gmra.mrb[0].mxu0 %v1703
    %v1880 = vpop.f32.mrb[0].mxu0
    %v1881 = vadd.f32 0.0, %v1880
    %v1882 = vpop.f32.mrb[0].mxu0
    %1883 = vmatprep.mubr.f32.mxu0 0.0
    %1884 = vmatmul.mubr.f32.gmra.mrb[0].mxu0 %v1706
    %v1885 = vpop.f32.mrb[0].mxu0
    %v1886 = vadd.f32 0.0, %v1885
    %v1887 = vpop.f32.mrb[0].mxu0
    %1888 = vmatprep.mubr.f32.mxu0 0.0
    %1889 = vmatmul.mubr.f32.gmra.mrb[0].mxu0 %v1709
    %v1890 = vpop.f32.mrb[0].mxu0
    %v1891 = vadd.f32 0.0, %v1890
    %v1892 = vpop.f32.mrb[0].mxu0
    %1893 = vmatprep.mubr.f32.mxu0 0.0
    %1894 = vmatmul.mubr.f32.gmra.mrb[0].mxu0 %v1712
    %v1895 = vpop.f32.mrb[0].mxu0
    %v1896 = vadd.f32 0.0, %v1895
    %v1897 = vpop.f32.mrb[0].mxu0
    %1898 = vdwg.mxu0
    %vm1899 = vcmask 195584
    %1900 = vst.msk [vmem:[#allocation5] sm:$0xff] %vm1899, %v1781
    %1901 = vst.msk [vmem:[#allocation5 + $0x8] sm:$0xff] %vm1899, %v1786
    %1902 = vst.msk [vmem:[#allocation5 + $0x10] sm:$0xff] %vm1899, %v1791
    %1903 = vst.msk [vmem:[#allocation5 + $0x18] sm:$0xff] %vm1899, %v1796
    %1904 = vst.msk [vmem:[#allocation5 + $0x20] sm:$0xff] %vm1899, %v1801
    %1905 = vst.msk [vmem:[#allocation5 + $0x28] sm:$0xff] %vm1899, %v1806
    %1906 = vst.msk [vmem:[#allocation5 + $0x30] sm:$0xff] %vm1899, %v1811
    %1907 = vst.msk [vmem:[#allocation5 + $0x38] sm:$0xff] %vm1899, %v1816
    %1908 = vst.msk [vmem:[#allocation5 + $0x40] sm:$0xff] %vm1899, %v1821
    %1909 = vst.msk [vmem:[#allocation5 + $0x48] sm:$0xff] %vm1899, %v1826
    %1910 = vst.msk [vmem:[#allocation5 + $0x50] sm:$0xff] %vm1899, %v1831
    %1911 = vst.msk [vmem:[#allocation5 + $0x58] sm:$0xff] %vm1899, %v1836
    %1912 = vst.msk [vmem:[#allocation5 + $0x60] sm:$0xff] %vm1899, %v1841
    %1913 = vst.msk [vmem:[#allocation5 + $0x68] sm:$0xff] %vm1899, %v1846
    %1914 = vst.msk [vmem:[#allocation5 + $0x70] sm:$0xff] %vm1899, %v1851
    %1915 = vst.msk [vmem:[#allocation5 + $0x78] sm:$0xff] %vm1899, %v1856
    %1916 = vst.msk [vmem:[#allocation5 + $0x80] sm:$0xff] %vm1899, %v1861
    %1917 = vst.msk [vmem:[#allocation5 + $0x88] sm:$0xff] %vm1899, %v1866
    %1918 = vst.msk [vmem:[#allocation5 + $0x90] sm:$0xff] %vm1899, %v1871
    %1919 = vst.msk [vmem:[#allocation5 + $0x98] sm:$0xff] %vm1899, %v1876
    %1920 = vst.msk [vmem:[#allocation5 + $0xa0] sm:$0xff] %vm1899, %v1881
    %1921 = vst.msk [vmem:[#allocation5 + $0xa8] sm:$0xff] %vm1899, %v1886
    %1922 = vst.msk [vmem:[#allocation5 + $0xb0] sm:$0xff] %vm1899, %v1891
    %1923 = vst.msk [vmem:[#allocation5 + $0xb8] sm:$0xff] %vm1899, %v1896
    // Predicated region
    $region18: #{bilinear_resize_nchw.1} parent=1 // pred_check
      _
    $region19: #{bilinear_resize_nchw.1} parent=1 // pred_check_branch
      %1925 = sbr.rel (0) target = $region21
    $region20: #{bilinear_resize_nchw.1} parent=1 // pred_region
      %s1927 = ssub.s32 3072, 3072
      %1928 = vsyncadd [#allocation4], %s1927
      %s1929 = sshll.u32 [#allocation5], 4
      %s1930 = int_to_ptr.vmem [resolvable:$true] %s1929
      %1935 = dma.vmem_to_hbm [thread:$0]  %s1930, 3072, %s3, [#allocation4], 128, 128, 8
    $region21: #{bilinear_resize_nchw.1} parent=1 // pred_fallthru
      _
    // Predicated region
    $region22: #{bilinear_resize_nchw.1} parent=1 // pred_check
      _
    $region23: #{bilinear_resize_nchw.1} parent=1 // pred_check_branch
      %1937 = sbr.rel (0) target = $region25
    $region24: #{bilinear_resize_nchw.1} parent=1 // pred_region
      %1938 = dma.done [#allocation4], 3072
    $region25: #{bilinear_resize_nchw.1} parent=1 // pred_fallthru
      _
    %1939 = vsyncpa [#allocation3], 1
    %1940 = vsyncpa [#allocation4], 1

</llo_original>
